<compile_context>
chip_gen: v7x
topology: tpu7x:2x2x1
jax: 0.10.0
libtpu: 0.0.40
codegen_flags: <defaults>
</compile_context>

<pallas_src>
import functools
import math

import jax
import jax.numpy as jnp
from jax import lax
from jax.experimental import pallas as pl
from jax.experimental.pallas import tpu as pltpu

LANE = 128
_E = math.e                      # diag(exp(h @ h.T)) for unit-norm rows h
_VMEM_LIMIT = 48 * 1024 * 1024   # > 16/32 MiB defaults, < v7x 64 MiB physical


def _round_up(x, m):
    return ((x + m - 1) // m) * m


# ----------------------------------------------------------------------------
# Pallas kernels
# ----------------------------------------------------------------------------
def fused_encoder_kernel(adj_ref, feat_ref, wg_ref, bg_ref, wm_ref, vm_ref,
                         pred_out, tproj_out, *, alphas, eps, d):
    """One augmented view: online GCN->proj->pred and target GCN->proj.

    Outputs are already L2-normalized (F.normalize semantics) so the loss
    kernel never has to renormalize per row-block.
    """
    a_og, a_op, a_pr, a_tg, a_tp = alphas
    adj = adj_ref[0]          # [N, N]
    feat = feat_ref[0]        # [N, Fp]

    def prelu(x, a):
        return jnp.where(x >= 0.0, x, a * x)

    # Online + target GCN fused along the output dim: one feat@W and one
    # adj@(XW) at width 2*d instead of two at width d.
    xw = jnp.dot(feat, wg_ref[...], preferred_element_type=jnp.float32)
    g = jnp.dot(adj, xw, preferred_element_type=jnp.float32) + bg_ref[...]
    o_rep = prelu(g[:, :d], a_og)
    t_rep = prelu(g[:, d:], a_tg)

    def mlp(x, wi, vi, alpha):
        # Linear -> BatchNorm1d (training batch stats, biased var) -> PReLU -> Linear
        w1 = wm_ref[wi]
        w2 = wm_ref[wi + 1]
        b1 = vm_ref[vi]
        gamma = vm_ref[vi + 1]
        bshift = vm_ref[vi + 2]
        b2 = vm_ref[vi + 3]
        y = jnp.dot(x, w1, preferred_element_type=jnp.float32) + b1
        mean = jnp.mean(y, axis=0, keepdims=True)
        var = jnp.mean(jnp.square(y - mean), axis=0, keepdims=True)
        yhat = (y - mean) * lax.rsqrt(var + eps) * gamma + bshift
        z = prelu(yhat, alpha)
        return jnp.dot(z, w2, preferred_element_type=jnp.float32) + b2

    def l2norm(v):
        # F.normalize(p=2, dim=-1): v / max(||v||, 1e-12) == v*rsqrt(max(ss,1e-24))
        ssq = jnp.sum(v * v, axis=-1, keepdims=True)
        return v * lax.rsqrt(jnp.maximum(ssq, 1e-24))

    o_proj = mlp(o_rep, 0, 0, a_op)
    o_pred = mlp(o_proj, 2, 4, a_pr)
    # target branch (stop-gradient branch in torch; same forward math)
    t_proj = mlp(t_rep, 4, 8, a_tp)

    pred_out[0] = l2norm(o_pred)
    tproj_out[0] = l2norm(t_proj)


def fused_loss_kernel(predb_ref, tprojb_ref, pred_ref, tproj_ref, o_ref,
                      *, beta, n_rows):
    """Row-block streamed MERIT loss; accumulates the final scalar mean.

    For each block of R rows, six (R, N) exp-similarity tiles are built and
    reduced immediately (nothing N x N is resident), with no operand
    transposes (dot_general contracts the last dims directly).  Computing
    inter in both orientations (h1@h2.T rows and h2@h1.T rows) costs one
    extra matmul vs the single-block transpose-reuse trick, but keeps the
    kernel fully streaming: only a (1,1) scalar carries across blocks and no
    N x N transpose / O(N) column-sum scratch is needed.
    """
    b = pl.program_id(0)

    @pl.when(b == 0)
    def _():
        o_ref[...] = jnp.zeros_like(o_ref)

    h1b = predb_ref[0]       # [R, D] (already L2-normalized)
    h2b = predb_ref[1]
    z1b = tprojb_ref[0]
    z2b = tprojb_ref[1]
    h1 = pred_ref[0]         # [N, D]
    h2 = pred_ref[1]
    z1 = tproj_ref[0]
    z2 = tproj_ref[1]

    def exp_sim(a, c):
        # exp(a @ c.T) without materializing c.T
        s = lax.dot_general(a, c, (((1,), (1,)), ((), ())),
                            preferred_element_type=jnp.float32)
        return jnp.exp(s)

    def row_sum(m):                              # [R, N] -> [R, 1]
        return jnp.sum(m, axis=-1, keepdims=True)

    def total(v):                                # [R, k] -> [1, 1]
        return jnp.sum(jnp.sum(v, axis=-1, keepdims=True), axis=0,
                       keepdims=True)

    s_intra1 = row_sum(exp_sim(h1b, h1))
    s_inter12 = row_sum(exp_sim(h1b, h2))
    s_intra2 = row_sum(exp_sim(h2b, h2))
    s_inter21 = row_sum(exp_sim(h2b, h1))
    s_cross1 = row_sum(exp_sim(h1b, z2))
    s_cross2 = row_sum(exp_sim(h2b, z1))

    # -log(d/s) == log(s) - log(d); log(diag) terms are raw dot products and
    # diag(intra) == e exactly (unit-norm rows).
    net1 = jnp.sum(jnp.log(s_intra1 + s_inter12 - _E), axis=0, keepdims=True)
    net2 = jnp.sum(jnp.log(s_intra2 + s_inter21 - _E), axis=0, keepdims=True)
    view1 = jnp.sum(jnp.log(s_cross1), axis=0, keepdims=True)
    view2 = jnp.sum(jnp.log(s_cross2), axis=0, keepdims=True)

    dot12 = total(h1b * h2b)    # sum_i h1_i . h2_i  (== log diag(inter))
    dot1z2 = total(h1b * z2b)
    dot2z1 = total(h2b * z1b)

    part = (beta * (net1 + net2 - 2.0 * dot12)
            + (1.0 - beta) * (view1 + view2 - dot1z2 - dot2z1))
    o_ref[...] += part * (0.5 / n_rows)


# ----------------------------------------------------------------------------
# pallas_call wrappers
# ----------------------------------------------------------------------------
def fused_encoder(adj, feat, packed, alphas, *, eps=1e-5):
    """adj: [2,N,N], feat: [2,N,Fp], packed: (wg, bg, wm, vm)."""
    n = adj.shape[1]
    fp = feat.shape[-1]
    wg, bg, wm, vm = packed
    d = wm.shape[-1]

    kernel = functools.partial(fused_encoder_kernel, alphas=alphas, eps=eps,
                               d=d)
    # TODO(synk): weights are view-invariant; single-buffering their pipeline
    #             (pl.Buffered(1)) would save one buffer each -- left default
    #             (double-buffered) for robustness.
    in_specs = [
        pl.BlockSpec((1, n, n), lambda v: (v, 0, 0)),
        pl.BlockSpec((1, n, fp), lambda v: (v, 0, 0)),
        pl.BlockSpec(wg.shape, lambda v: (0, 0)),
        pl.BlockSpec(bg.shape, lambda v: (0, 0)),
        pl.BlockSpec(wm.shape, lambda v: (0, 0, 0)),
        pl.BlockSpec(vm.shape, lambda v: (0, 0, 0)),
    ]
    out_specs = (pl.BlockSpec((1, n, d), lambda v: (v, 0, 0)),
                 pl.BlockSpec((1, n, d), lambda v: (v, 0, 0)))
    out_shape = (jax.ShapeDtypeStruct((2, n, d), jnp.float32),
                 jax.ShapeDtypeStruct((2, n, d), jnp.float32))
    return pl.pallas_call(
        kernel,
        grid=(2,),
        in_specs=in_specs,
        out_specs=out_specs,
        out_shape=out_shape,
        compiler_params=pltpu.CompilerParams(
            dimension_semantics=("parallel",),       # 2 views -> 2 TCs on v7x
            vmem_limit_bytes=_VMEM_LIMIT),
    )(adj, feat, wg, bg, wm, vm)


def _pick_row_block(n, target=256):
    if n % target == 0:
        return target
    return n
    # TODO(synk): generalize to ragged N with a masked tail block.


def fused_loss(pred_stack, tproj_stack, beta):
    _, n, d = pred_stack.shape
    r = _pick_row_block(n)
    nb = n // r
    kernel = functools.partial(fused_loss_kernel, beta=beta, n_rows=n)
    out = pl.pallas_call(
        kernel,
        grid=(nb,),
        in_specs=[
            pl.BlockSpec((2, r, d), lambda b: (0, b, 0)),   # h1/h2 row block
            pl.BlockSpec((2, r, d), lambda b: (0, b, 0)),   # z1/z2 row block
            pl.BlockSpec((2, n, d), lambda b: (0, 0, 0)),   # full h (resident)
            pl.BlockSpec((2, n, d), lambda b: (0, 0, 0)),   # full z (resident)
        ],
        out_specs=pl.BlockSpec((1, 1), lambda b: (0, 0)),
        out_shape=jax.ShapeDtypeStruct((1, 1), jnp.float32),
        compiler_params=pltpu.CompilerParams(
            dimension_semantics=("arbitrary",),             # scalar accumulates
            vmem_limit_bytes=_VMEM_LIMIT),
    )(pred_stack, tproj_stack, pred_stack, tproj_stack)
    return out[0, 0]


# ----------------------------------------------------------------------------
# parameter construction, packing/padding, and the MERIT forward pass
# ----------------------------------------------------------------------------
def init_mlp(key, inp, hidden, outp):
    k1, k2, k3, k4 = jax.random.split(key, 4)
    return {
        "w1": 0.1 * jax.random.normal(k1, (inp, hidden), jnp.float32),
        "b1": 0.1 * jax.random.normal(k2, (1, hidden), jnp.float32),
        "gamma": jnp.ones((1, hidden), jnp.float32),
        "beta": jnp.zeros((1, hidden), jnp.float32),
        "alpha": 0.25,  # PReLU default init
        "w2": 0.1 * jax.random.normal(k3, (hidden, outp), jnp.float32),
        "b2": 0.1 * jax.random.normal(k4, (1, outp), jnp.float32),
    }


def init_gcn(key, in_ft, out_ft):
    k1, k2 = jax.random.split(key)
    return {
        "w": 0.1 * jax.random.normal(k1, (in_ft, out_ft), jnp.float32),
        "b": 0.1 * jax.random.normal(k2, (1, out_ft), jnp.float32),
        "alpha": 0.25,
    }


def init_merit(key, feat_size, out_ft, proj_size, proj_hidden,
               pred_size, pred_hidden):
    k1, k2, k3 = jax.random.split(key, 3)
    online = {
        "gcn": init_gcn(k1, feat_size, out_ft),
        "proj": init_mlp(k2, out_ft, proj_hidden, proj_size),
    }
    target = jax.tree_util.tree_map(lambda x: x, online)  # deepcopy of online
    pred = init_mlp(k3, proj_size, pred_hidden, pred_size)
    return {"online": online, "target": target, "pred": pred}


def _pad2(a, rows, cols):
    return jnp.pad(a, ((0, rows - a.shape[0]), (0, cols - a.shape[1])))


def _pad_last(x, mult):
    pad = (-x.shape[-1]) % mult
    if pad == 0:
        return x
    widths = [(0, 0)] * (x.ndim - 1) + [(0, pad)]
    return jnp.pad(x, widths)


def _prepare_packed_params(params):
    og = params["online"]["gcn"]
    tg = params["target"]["gcn"]
    op = params["online"]["proj"]
    pr = params["pred"]
    tp = params["target"]["proj"]

    # One padded width D for every hidden/output dim of the GCN+MLP chain.
    # Zero-padded channels stay exactly zero through Linear/BN/PReLU, so the
    # padding is mathematically inert; it also makes every operand/store
    # lane-dense.
    dims = [og["w"].shape[1], tg["w"].shape[1]]
    for m in (op, pr, tp):
        dims += [m["w1"].shape[1], m["w2"].shape[1]]
    d = _round_up(max(dims), LANE)
    fp = _round_up(og["w"].shape[0], LANE)

    # GCN: online|target fused along the output dim -> one 2*d-wide matmul.
    wg = jnp.concatenate([_pad2(og["w"], fp, d), _pad2(tg["w"], fp, d)],
                         axis=1)                                   # (Fp, 2d)
    bg = jnp.concatenate([_pad2(og["b"], 1, d), _pad2(tg["b"], 1, d)],
                         axis=1)                                   # (1, 2d)

    # MLP weights stacked into one (6, d, d) array, vectors into (12, 1, d):
    # a handful of contiguous DMAs instead of 22 tiny ones.
    wm = jnp.stack([_pad2(op["w1"], d, d), _pad2(op["w2"], d, d),
                    _pad2(pr["w1"], d, d), _pad2(pr["w2"], d, d),
                    _pad2(tp["w1"], d, d), _pad2(tp["w2"], d, d)])
    vecs = []
    for m in (op, pr, tp):
        vecs += [m["b1"], m["gamma"], m["beta"], m["b2"]]
    vm = jnp.stack([_pad2(v, 1, d) for v in vecs])                 # (12, 1, d)

    alphas = (og["alpha"], op["alpha"], pr["alpha"], tg["alpha"], tp["alpha"])
    return (wg, bg, wm, vm), alphas


def merit_forward(params, adj, feat, beta):
    """adj: [2,N,N], feat: [2,N,F] (both augmented views pre-stacked, so the
    largest tensor is never copied per forward)."""
    packed, alphas = _prepare_packed_params(params)
    feat = _pad_last(feat, LANE)
    # one kernel: online preds + target projections (L2-normalized), both views
    pred_stack, tproj_stack = fused_encoder(adj, feat, packed, alphas)
    # one kernel: both loss directions, streamed over row blocks, final mean
    return fused_loss(pred_stack, tproj_stack, beta)


# ----------------------------------------------------------------------------
# Plain-JAX reference (unpadded) for correctness sanity check
# ----------------------------------------------------------------------------
def _ref_mlp(x, p):
    y = x @ p["w1"] + p["b1"]
    mean = jnp.mean(y, axis=0, keepdims=True)
    var = jnp.mean((y - mean) ** 2, axis=0, keepdims=True)
    yhat = (y - mean) / jnp.sqrt(var + 1e-5) * p["gamma"] + p["beta"]
    z = jnp.where(yhat >= 0, yhat, p["alpha"] * yhat)
    return z @ p["w2"] + p["b2"]


def _ref_gcn(adj, x, p):
    out = adj @ (x @ p["w"]) + p["b"]
    return jnp.where(out >= 0, out, p["alpha"] * out)


def _ref_loss(h1, h2, z, beta):
    def norm(v):
        return v / jnp.maximum(jnp.linalg.norm(v, axis=-1, keepdims=True),
                               1e-12)
    h1n, h2n, zn = norm(h1), norm(h2), norm(z)
    intra = jnp.exp(h1n @ h1n.T)
    inter = jnp.exp(h1n @ h2n.T)
    cross = jnp.exp(h1n @ zn.T)
    l_net = -jnp.log(jnp.diag(inter) /
                     (intra.sum(-1) + inter.sum(-1) - jnp.diag(intra)))
    l_view = -jnp.log(jnp.diag(cross) / cross.sum(-1))
    return beta * l_net + (1.0 - beta) * l_view


def _ref_forward(params, adj1, adj2, feat1, feat2, beta):
    def enc(adj, feat, e):
        return _ref_mlp(_ref_gcn(adj, feat, e["gcn"]), e["proj"])
    p1 = _ref_mlp(enc(adj1, feat1, params["online"]), params["pred"])
    p2 = _ref_mlp(enc(adj2, feat2, params["online"]), params["pred"])
    t1 = enc(adj1, feat1, params["target"])
    t2 = enc(adj2, feat2, params["target"])
    l1 = _ref_loss(p1, p2, t2, beta)
    l2 = _ref_loss(p2, p1, t1, beta)
    return jnp.mean(0.5 * (l1 + l2))


# ----------------------------------------------------------------------------
if __name__ == "__main__":
    N = 16          # number of graph nodes (multiple of 8 sublanes)
    FEAT = 32       # feat_size
    OUT_FT = 32     # gnn.out_ft
    PROJ_H, PROJ = 64, 32
    PRED_H, PRED = 64, 32
    BETA = 0.6

    key = jax.random.PRNGKey(0)
    kp, ka1, ka2, kf1, kf2 = jax.random.split(key, 5)

    params = init_merit(kp, FEAT, OUT_FT, PROJ, PROJ_H, PRED, PRED_H)

    # deterministic dense, row-normalized adjacency with self loops
    def make_adj(k):
        a = (jax.random.uniform(k, (N, N)) > 0.7).astype(jnp.float32)
        a = a + jnp.eye(N, dtype=jnp.float32)
        return a / jnp.sum(a, axis=-1, keepdims=True)

    # Build the two augmented views pre-stacked (no per-forward stack copy).
    adj = jnp.stack([make_adj(ka1), make_adj(ka2)])                  # [2,N,N]
    feat = jnp.stack([jax.random.normal(kf1, (N, FEAT), jnp.float32),
                      jax.random.normal(kf2, (N, FEAT), jnp.float32)])

    loss = merit_forward(params, adj, feat, BETA)
    loss = jax.block_until_ready(loss)

    ref = _ref_forward(params, adj[0], adj[1], feat[0], feat[1], BETA)
    assert jnp.allclose(loss, ref, rtol=1e-4, atol=1e-4), (loss, ref)

    print("KERNEL_OK")
</pallas_src>

<mosaic_0001>
module attributes {stable_mosaic.version = 11 : i64} {
  func.func @fused_encoder_kernel(%arg0: i32, %arg1: memref<1x16x16xf32, #tpu.memory_space<vmem>>, %arg2: memref<1x16x128xf32, #tpu.memory_space<vmem>>, %arg3: memref<128x256xf32, #tpu.memory_space<vmem>>, %arg4: memref<1x256xf32, #tpu.memory_space<vmem>>, %arg5: memref<6x128x128xf32, #tpu.memory_space<vmem>>, %arg6: memref<12x1x128xf32, #tpu.memory_space<vmem>>, %arg7: memref<1x16x128xf32, #tpu.memory_space<vmem>>, %arg8: memref<1x16x128xf32, #tpu.memory_space<vmem>>) attributes {dimension_semantics = [#tpu.dimension_semantics<parallel>], iteration_bounds = array<i64: 2>, scalar_prefetch = 0 : i64, scratch_operands = 0 : i64, tpu.core_type = #tpu.core_type<tc>, window_params = [{transform_indices = @transform_0, window_bounds = array<i64: 1, 16, 16>}, {transform_indices = @transform_1, window_bounds = array<i64: 1, 16, 128>}, {pipeline_mode = #tpu.pipeline_mode<synchronous>, transform_indices = @transform_2, window_bounds = array<i64: 128, 256>}, {pipeline_mode = #tpu.pipeline_mode<synchronous>, transform_indices = @transform_3, window_bounds = array<i64: 1, 256>}, {pipeline_mode = #tpu.pipeline_mode<synchronous>, transform_indices = @transform_4, window_bounds = array<i64: 6, 128, 128>}, {pipeline_mode = #tpu.pipeline_mode<synchronous>, transform_indices = @transform_5, window_bounds = array<i64: 12, 1, 128>}, {transform_indices = @transform_6, window_bounds = array<i64: 1, 16, 128>}, {transform_indices = @transform_7, window_bounds = array<i64: 1, 16, 128>}]} {
    %c0 = arith.constant 0 : index
    %c0_0 = arith.constant 0 : index
    %c0_1 = arith.constant 0 : index
    %0 = vector.load %arg1[%c0, %c0_0, %c0_1] : memref<1x16x16xf32, #tpu.memory_space<vmem>>, vector<1x16x16xf32>
    %1 = vector.shape_cast %0 : vector<1x16x16xf32> to vector<16x16xf32>
    %c0_2 = arith.constant 0 : index
    %c0_3 = arith.constant 0 : index
    %c0_4 = arith.constant 0 : index
    %2 = vector.load %arg2[%c0_2, %c0_3, %c0_4] : memref<1x16x128xf32, #tpu.memory_space<vmem>>, vector<1x16x128xf32>
    %3 = vector.shape_cast %2 : vector<1x16x128xf32> to vector<16x128xf32>
    %c0_5 = arith.constant 0 : index
    %c0_6 = arith.constant 0 : index
    %4 = vector.load %arg3[%c0_5, %c0_6] : memref<128x256xf32, #tpu.memory_space<vmem>>, vector<128x256xf32>
    %cst = arith.constant dense<0.000000e+00> : vector<16x256xf32>
    %5 = tpu.matmul %3, %4, %cst {dimension_numbers = #tpu.dot_dimension_numbers<[1], [0], [0], [1], [0, 0, 1, 1], [], []>} : vector<16x128xf32>, vector<128x256xf32>, vector<16x256xf32> -> vector<16x256xf32>
    %cst_7 = arith.constant dense<0.000000e+00> : vector<16x256xf32>
    %6 = tpu.matmul %1, %5, %cst_7 {dimension_numbers = #tpu.dot_dimension_numbers<[1], [0], [0], [1], [0, 0, 1, 1], [], []>} : vector<16x16xf32>, vector<16x256xf32>, vector<16x256xf32> -> vector<16x256xf32>
    %c0_8 = arith.constant 0 : index
    %c0_9 = arith.constant 0 : index
    %7 = vector.load %arg4[%c0_8, %c0_9] : memref<1x256xf32, #tpu.memory_space<vmem>>, vector<1x256xf32>
    %8 = vector.broadcast %7 : vector<1x256xf32> to vector<16x256xf32>
    %9 = arith.addf %6, %8 : vector<16x256xf32>
    %10 = vector.extract_strided_slice %9 {offsets = [0, 0], sizes = [16, 128], strides = [1, 1]} : vector<16x256xf32> to vector<16x128xf32>
    %cst_10 = arith.constant 0.000000e+00 : f32
    %11 = vector.broadcast %cst_10 : f32 to vector<16x128xf32>
    %12 = arith.cmpf oge, %10, %11 : vector<16x128xf32>
    %cst_11 = arith.constant 2.500000e-01 : f32
    %13 = vector.broadcast %cst_11 : f32 to vector<16x128xf32>
    %14 = arith.mulf %13, %10 : vector<16x128xf32>
    %15 = arith.select %12, %10, %14 : vector<16x128xi1>, vector<16x128xf32>
    %16 = vector.extract_strided_slice %9 {offsets = [0, 128], sizes = [16, 128], strides = [1, 1]} : vector<16x256xf32> to vector<16x128xf32>
    %cst_12 = arith.constant 0.000000e+00 : f32
    %17 = vector.broadcast %cst_12 : f32 to vector<16x128xf32>
    %18 = arith.cmpf oge, %16, %17 : vector<16x128xf32>
    %cst_13 = arith.constant 2.500000e-01 : f32
    %19 = vector.broadcast %cst_13 : f32 to vector<16x128xf32>
    %20 = arith.mulf %19, %16 : vector<16x128xf32>
    %21 = arith.select %18, %16, %20 : vector<16x128xi1>, vector<16x128xf32>
    %c0_14 = arith.constant 0 : index
    %c0_15 = arith.constant 0 : index
    %c0_16 = arith.constant 0 : index
    %22 = vector.load %arg5[%c0_14, %c0_15, %c0_16] : memref<6x128x128xf32, #tpu.memory_space<vmem>>, vector<1x128x128xf32>
    %23 = vector.shape_cast %22 : vector<1x128x128xf32> to vector<128x128xf32>
    %c1 = arith.constant 1 : index
    %c0_17 = arith.constant 0 : index
    %c0_18 = arith.constant 0 : index
    %24 = vector.load %arg5[%c1, %c0_17, %c0_18] : memref<6x128x128xf32, #tpu.memory_space<vmem>>, vector<1x128x128xf32>
    %25 = vector.shape_cast %24 : vector<1x128x128xf32> to vector<128x128xf32>
    %c0_19 = arith.constant 0 : index
    %c0_20 = arith.constant 0 : index
    %c0_21 = arith.constant 0 : index
    %26 = vector.load %arg6[%c0_19, %c0_20, %c0_21] : memref<12x1x128xf32, #tpu.memory_space<vmem>>, vector<1x1x128xf32>
    %27 = vector.shape_cast %26 : vector<1x1x128xf32> to vector<1x128xf32>
    %c1_22 = arith.constant 1 : index
    %c0_23 = arith.constant 0 : index
    %c0_24 = arith.constant 0 : index
    %28 = vector.load %arg6[%c1_22, %c0_23, %c0_24] : memref<12x1x128xf32, #tpu.memory_space<vmem>>, vector<1x1x128xf32>
    %29 = vector.shape_cast %28 : vector<1x1x128xf32> to vector<1x128xf32>
    %c2 = arith.constant 2 : index
    %c0_25 = arith.constant 0 : index
    %c0_26 = arith.constant 0 : index
    %30 = vector.load %arg6[%c2, %c0_25, %c0_26] : memref<12x1x128xf32, #tpu.memory_space<vmem>>, vector<1x1x128xf32>
    %31 = vector.shape_cast %30 : vector<1x1x128xf32> to vector<1x128xf32>
    %c3 = arith.constant 3 : index
    %c0_27 = arith.constant 0 : index
    %c0_28 = arith.constant 0 : index
    %32 = vector.load %arg6[%c3, %c0_27, %c0_28] : memref<12x1x128xf32, #tpu.memory_space<vmem>>, vector<1x1x128xf32>
    %33 = vector.shape_cast %32 : vector<1x1x128xf32> to vector<1x128xf32>
    %cst_29 = arith.constant dense<0.000000e+00> : vector<16x128xf32>
    %34 = tpu.matmul %15, %23, %cst_29 {dimension_numbers = #tpu.dot_dimension_numbers<[1], [0], [0], [1], [0, 0, 1, 1], [], []>} : vector<16x128xf32>, vector<128x128xf32>, vector<16x128xf32> -> vector<16x128xf32>
    %35 = vector.broadcast %27 : vector<1x128xf32> to vector<16x128xf32>
    %36 = arith.addf %34, %35 : vector<16x128xf32>
    %cst_30 = arith.constant dense<0.000000e+00> : vector<128xf32>
    %37 = vector.multi_reduction <add>, %36, %cst_30 [0] : vector<16x128xf32> to vector<128xf32>
    %38 = vector.shape_cast %37 : vector<128xf32> to vector<1x128xf32>
    %cst_31 = arith.constant 1.600000e+01 : f32
    %39 = vector.broadcast %cst_31 : f32 to vector<1x128xf32>
    %40 = arith.divf %38, %39 : vector<1x128xf32>
    %41 = vector.broadcast %40 : vector<1x128xf32> to vector<16x128xf32>
    %42 = arith.subf %36, %41 : vector<16x128xf32>
    %43 = arith.mulf %42, %42 : vector<16x128xf32>
    %cst_32 = arith.constant dense<0.000000e+00> : vector<128xf32>
    %44 = vector.multi_reduction <add>, %43, %cst_32 [0] : vector<16x128xf32> to vector<128xf32>
    %45 = vector.shape_cast %44 : vector<128xf32> to vector<1x128xf32>
    %cst_33 = arith.constant 1.600000e+01 : f32
    %46 = vector.broadcast %cst_33 : f32 to vector<1x128xf32>
    %47 = arith.divf %45, %46 : vector<1x128xf32>
    %48 = vector.broadcast %40 : vector<1x128xf32> to vector<16x128xf32>
    %49 = arith.subf %36, %48 : vector<16x128xf32>
    %cst_34 = arith.constant 9.99999974E-6 : f32
    %50 = vector.broadcast %cst_34 : f32 to vector<1x128xf32>
    %51 = arith.addf %47, %50 : vector<1x128xf32>
    %52 = math.rsqrt %51 : vector<1x128xf32>
    %53 = vector.broadcast %52 : vector<1x128xf32> to vector<16x128xf32>
    %54 = arith.mulf %49, %53 : vector<16x128xf32>
    %55 = vector.broadcast %29 : vector<1x128xf32> to vector<16x128xf32>
    %56 = arith.mulf %54, %55 : vector<16x128xf32>
    %57 = vector.broadcast %31 : vector<1x128xf32> to vector<16x128xf32>
    %58 = arith.addf %56, %57 : vector<16x128xf32>
    %cst_35 = arith.constant 0.000000e+00 : f32
    %59 = vector.broadcast %cst_35 : f32 to vector<16x128xf32>
    %60 = arith.cmpf oge, %58, %59 : vector<16x128xf32>
    %cst_36 = arith.constant 2.500000e-01 : f32
    %61 = vector.broadcast %cst_36 : f32 to vector<16x128xf32>
    %62 = arith.mulf %61, %58 : vector<16x128xf32>
    %63 = arith.select %60, %58, %62 : vector<16x128xi1>, vector<16x128xf32>
    %cst_37 = arith.constant dense<0.000000e+00> : vector<16x128xf32>
    %64 = tpu.matmul %63, %25, %cst_37 {dimension_numbers = #tpu.dot_dimension_numbers<[1], [0], [0], [1], [0, 0, 1, 1], [], []>} : vector<16x128xf32>, vector<128x128xf32>, vector<16x128xf32> -> vector<16x128xf32>
    %65 = vector.broadcast %33 : vector<1x128xf32> to vector<16x128xf32>
    %66 = arith.addf %64, %65 : vector<16x128xf32>
    %c2_38 = arith.constant 2 : index
    %c0_39 = arith.constant 0 : index
    %c0_40 = arith.constant 0 : index
    %67 = vector.load %arg5[%c2_38, %c0_39, %c0_40] : memref<6x128x128xf32, #tpu.memory_space<vmem>>, vector<1x128x128xf32>
    %68 = vector.shape_cast %67 : vector<1x128x128xf32> to vector<128x128xf32>
    %c3_41 = arith.constant 3 : index
    %c0_42 = arith.constant 0 : index
    %c0_43 = arith.constant 0 : index
    %69 = vector.load %arg5[%c3_41, %c0_42, %c0_43] : memref<6x128x128xf32, #tpu.memory_space<vmem>>, vector<1x128x128xf32>
    %70 = vector.shape_cast %69 : vector<1x128x128xf32> to vector<128x128xf32>
    %c4 = arith.constant 4 : index
    %c0_44 = arith.constant 0 : index
    %c0_45 = arith.constant 0 : index
    %71 = vector.load %arg6[%c4, %c0_44, %c0_45] : memref<12x1x128xf32, #tpu.memory_space<vmem>>, vector<1x1x128xf32>
    %72 = vector.shape_cast %71 : vector<1x1x128xf32> to vector<1x128xf32>
    %c5 = arith.constant 5 : index
    %c0_46 = arith.constant 0 : index
    %c0_47 = arith.constant 0 : index
    %73 = vector.load %arg6[%c5, %c0_46, %c0_47] : memref<12x1x128xf32, #tpu.memory_space<vmem>>, vector<1x1x128xf32>
    %74 = vector.shape_cast %73 : vector<1x1x128xf32> to vector<1x128xf32>
    %c6 = arith.constant 6 : index
    %c0_48 = arith.constant 0 : index
    %c0_49 = arith.constant 0 : index
    %75 = vector.load %arg6[%c6, %c0_48, %c0_49] : memref<12x1x128xf32, #tpu.memory_space<vmem>>, vector<1x1x128xf32>
    %76 = vector.shape_cast %75 : vector<1x1x128xf32> to vector<1x128xf32>
    %c7 = arith.constant 7 : index
    %c0_50 = arith.constant 0 : index
    %c0_51 = arith.constant 0 : index
    %77 = vector.load %arg6[%c7, %c0_50, %c0_51] : memref<12x1x128xf32, #tpu.memory_space<vmem>>, vector<1x1x128xf32>
    %78 = vector.shape_cast %77 : vector<1x1x128xf32> to vector<1x128xf32>
    %cst_52 = arith.constant dense<0.000000e+00> : vector<16x128xf32>
    %79 = tpu.matmul %66, %68, %cst_52 {dimension_numbers = #tpu.dot_dimension_numbers<[1], [0], [0], [1], [0, 0, 1, 1], [], []>} : vector<16x128xf32>, vector<128x128xf32>, vector<16x128xf32> -> vector<16x128xf32>
    %80 = vector.broadcast %72 : vector<1x128xf32> to vector<16x128xf32>
    %81 = arith.addf %79, %80 : vector<16x128xf32>
    %cst_53 = arith.constant dense<0.000000e+00> : vector<128xf32>
    %82 = vector.multi_reduction <add>, %81, %cst_53 [0] : vector<16x128xf32> to vector<128xf32>
    %83 = vector.shape_cast %82 : vector<128xf32> to vector<1x128xf32>
    %cst_54 = arith.constant 1.600000e+01 : f32
    %84 = vector.broadcast %cst_54 : f32 to vector<1x128xf32>
    %85 = arith.divf %83, %84 : vector<1x128xf32>
    %86 = vector.broadcast %85 : vector<1x128xf32> to vector<16x128xf32>
    %87 = arith.subf %81, %86 : vector<16x128xf32>
    %88 = arith.mulf %87, %87 : vector<16x128xf32>
    %cst_55 = arith.constant dense<0.000000e+00> : vector<128xf32>
    %89 = vector.multi_reduction <add>, %88, %cst_55 [0] : vector<16x128xf32> to vector<128xf32>
    %90 = vector.shape_cast %89 : vector<128xf32> to vector<1x128xf32>
    %cst_56 = arith.constant 1.600000e+01 : f32
    %91 = vector.broadcast %cst_56 : f32 to vector<1x128xf32>
    %92 = arith.divf %90, %91 : vector<1x128xf32>
    %93 = vector.broadcast %85 : vector<1x128xf32> to vector<16x128xf32>
    %94 = arith.subf %81, %93 : vector<16x128xf32>
    %cst_57 = arith.constant 9.99999974E-6 : f32
    %95 = vector.broadcast %cst_57 : f32 to vector<1x128xf32>
    %96 = arith.addf %92, %95 : vector<1x128xf32>
    %97 = math.rsqrt %96 : vector<1x128xf32>
    %98 = vector.broadcast %97 : vector<1x128xf32> to vector<16x128xf32>
    %99 = arith.mulf %94, %98 : vector<16x128xf32>
    %100 = vector.broadcast %74 : vector<1x128xf32> to vector<16x128xf32>
    %101 = arith.mulf %99, %100 : vector<16x128xf32>
    %102 = vector.broadcast %76 : vector<1x128xf32> to vector<16x128xf32>
    %103 = arith.addf %101, %102 : vector<16x128xf32>
    %cst_58 = arith.constant 0.000000e+00 : f32
    %104 = vector.broadcast %cst_58 : f32 to vector<16x128xf32>
    %105 = arith.cmpf oge, %103, %104 : vector<16x128xf32>
    %cst_59 = arith.constant 2.500000e-01 : f32
    %106 = vector.broadcast %cst_59 : f32 to vector<16x128xf32>
    %107 = arith.mulf %106, %103 : vector<16x128xf32>
    %108 = arith.select %105, %103, %107 : vector<16x128xi1>, vector<16x128xf32>
    %cst_60 = arith.constant dense<0.000000e+00> : vector<16x128xf32>
    %109 = tpu.matmul %108, %70, %cst_60 {dimension_numbers = #tpu.dot_dimension_numbers<[1], [0], [0], [1], [0, 0, 1, 1], [], []>} : vector<16x128xf32>, vector<128x128xf32>, vector<16x128xf32> -> vector<16x128xf32>
    %110 = vector.broadcast %78 : vector<1x128xf32> to vector<16x128xf32>
    %111 = arith.addf %109, %110 : vector<16x128xf32>
    %c4_61 = arith.constant 4 : index
    %c0_62 = arith.constant 0 : index
    %c0_63 = arith.constant 0 : index
    %112 = vector.load %arg5[%c4_61, %c0_62, %c0_63] : memref<6x128x128xf32, #tpu.memory_space<vmem>>, vector<1x128x128xf32>
    %113 = vector.shape_cast %112 : vector<1x128x128xf32> to vector<128x128xf32>
    %c5_64 = arith.constant 5 : index
    %c0_65 = arith.constant 0 : index
    %c0_66 = arith.constant 0 : index
    %114 = vector.load %arg5[%c5_64, %c0_65, %c0_66] : memref<6x128x128xf32, #tpu.memory_space<vmem>>, vector<1x128x128xf32>
    %115 = vector.shape_cast %114 : vector<1x128x128xf32> to vector<128x128xf32>
    %c8 = arith.constant 8 : index
    %c0_67 = arith.constant 0 : index
    %c0_68 = arith.constant 0 : index
    %116 = vector.load %arg6[%c8, %c0_67, %c0_68] : memref<12x1x128xf32, #tpu.memory_space<vmem>>, vector<1x1x128xf32>
    %117 = vector.shape_cast %116 : vector<1x1x128xf32> to vector<1x128xf32>
    %c9 = arith.constant 9 : index
    %c0_69 = arith.constant 0 : index
    %c0_70 = arith.constant 0 : index
    %118 = vector.load %arg6[%c9, %c0_69, %c0_70] : memref<12x1x128xf32, #tpu.memory_space<vmem>>, vector<1x1x128xf32>
    %119 = vector.shape_cast %118 : vector<1x1x128xf32> to vector<1x128xf32>
    %c10 = arith.constant 10 : index
    %c0_71 = arith.constant 0 : index
    %c0_72 = arith.constant 0 : index
    %120 = vector.load %arg6[%c10, %c0_71, %c0_72] : memref<12x1x128xf32, #tpu.memory_space<vmem>>, vector<1x1x128xf32>
    %121 = vector.shape_cast %120 : vector<1x1x128xf32> to vector<1x128xf32>
    %c11 = arith.constant 11 : index
    %c0_73 = arith.constant 0 : index
    %c0_74 = arith.constant 0 : index
    %122 = vector.load %arg6[%c11, %c0_73, %c0_74] : memref<12x1x128xf32, #tpu.memory_space<vmem>>, vector<1x1x128xf32>
    %123 = vector.shape_cast %122 : vector<1x1x128xf32> to vector<1x128xf32>
    %cst_75 = arith.constant dense<0.000000e+00> : vector<16x128xf32>
    %124 = tpu.matmul %21, %113, %cst_75 {dimension_numbers = #tpu.dot_dimension_numbers<[1], [0], [0], [1], [0, 0, 1, 1], [], []>} : vector<16x128xf32>, vector<128x128xf32>, vector<16x128xf32> -> vector<16x128xf32>
    %125 = vector.broadcast %117 : vector<1x128xf32> to vector<16x128xf32>
    %126 = arith.addf %124, %125 : vector<16x128xf32>
    %cst_76 = arith.constant dense<0.000000e+00> : vector<128xf32>
    %127 = vector.multi_reduction <add>, %126, %cst_76 [0] : vector<16x128xf32> to vector<128xf32>
    %128 = vector.shape_cast %127 : vector<128xf32> to vector<1x128xf32>
    %cst_77 = arith.constant 1.600000e+01 : f32
    %129 = vector.broadcast %cst_77 : f32 to vector<1x128xf32>
    %130 = arith.divf %128, %129 : vector<1x128xf32>
    %131 = vector.broadcast %130 : vector<1x128xf32> to vector<16x128xf32>
    %132 = arith.subf %126, %131 : vector<16x128xf32>
    %133 = arith.mulf %132, %132 : vector<16x128xf32>
    %cst_78 = arith.constant dense<0.000000e+00> : vector<128xf32>
    %134 = vector.multi_reduction <add>, %133, %cst_78 [0] : vector<16x128xf32> to vector<128xf32>
    %135 = vector.shape_cast %134 : vector<128xf32> to vector<1x128xf32>
    %cst_79 = arith.constant 1.600000e+01 : f32
    %136 = vector.broadcast %cst_79 : f32 to vector<1x128xf32>
    %137 = arith.divf %135, %136 : vector<1x128xf32>
    %138 = vector.broadcast %130 : vector<1x128xf32> to vector<16x128xf32>
    %139 = arith.subf %126, %138 : vector<16x128xf32>
    %cst_80 = arith.constant 9.99999974E-6 : f32
    %140 = vector.broadcast %cst_80 : f32 to vector<1x128xf32>
    %141 = arith.addf %137, %140 : vector<1x128xf32>
    %142 = math.rsqrt %141 : vector<1x128xf32>
    %143 = vector.broadcast %142 : vector<1x128xf32> to vector<16x128xf32>
    %144 = arith.mulf %139, %143 : vector<16x128xf32>
    %145 = vector.broadcast %119 : vector<1x128xf32> to vector<16x128xf32>
    %146 = arith.mulf %144, %145 : vector<16x128xf32>
    %147 = vector.broadcast %121 : vector<1x128xf32> to vector<16x128xf32>
    %148 = arith.addf %146, %147 : vector<16x128xf32>
    %cst_81 = arith.constant 0.000000e+00 : f32
    %149 = vector.broadcast %cst_81 : f32 to vector<16x128xf32>
    %150 = arith.cmpf oge, %148, %149 : vector<16x128xf32>
    %cst_82 = arith.constant 2.500000e-01 : f32
    %151 = vector.broadcast %cst_82 : f32 to vector<16x128xf32>
    %152 = arith.mulf %151, %148 : vector<16x128xf32>
    %153 = arith.select %150, %148, %152 : vector<16x128xi1>, vector<16x128xf32>
    %cst_83 = arith.constant dense<0.000000e+00> : vector<16x128xf32>
    %154 = tpu.matmul %153, %115, %cst_83 {dimension_numbers = #tpu.dot_dimension_numbers<[1], [0], [0], [1], [0, 0, 1, 1], [], []>} : vector<16x128xf32>, vector<128x128xf32>, vector<16x128xf32> -> vector<16x128xf32>
    %155 = vector.broadcast %123 : vector<1x128xf32> to vector<16x128xf32>
    %156 = arith.addf %154, %155 : vector<16x128xf32>
    %157 = arith.mulf %111, %111 : vector<16x128xf32>
    %cst_84 = arith.constant dense<0.000000e+00> : vector<16xf32>
    %158 = vector.multi_reduction <add>, %157, %cst_84 [1] : vector<16x128xf32> to vector<16xf32>
    %159 = vector.shape_cast %158 : vector<16xf32> to vector<16x1xf32>
    %cst_85 = arith.constant 1.000000e-24 : f32
    %160 = vector.broadcast %cst_85 : f32 to vector<16x1xf32>
    %161 = arith.maximumf %159, %160 : vector<16x1xf32>
    %162 = math.rsqrt %161 : vector<16x1xf32>
    %163 = vector.broadcast %162 : vector<16x1xf32> to vector<16x128xf32>
    %164 = arith.mulf %111, %163 : vector<16x128xf32>
    %c0_86 = arith.constant 0 : index
    %c0_87 = arith.constant 0 : index
    %c0_88 = arith.constant 0 : index
    %165 = vector.load %arg7[%c0_86, %c0_87, %c0_88] : memref<1x16x128xf32, #tpu.memory_space<vmem>>, vector<1x16x128xf32>
    %166 = vector.shape_cast %165 : vector<1x16x128xf32> to vector<16x128xf32>
    %167 = vector.shape_cast %164 : vector<16x128xf32> to vector<1x16x128xf32>
    tpu.vector_store %arg7[%c0_86, %c0_87, %c0_88], %167 {strides = array<i32>} : memref<1x16x128xf32, #tpu.memory_space<vmem>>, vector<1x16x128xf32>,
    %168 = arith.mulf %156, %156 : vector<16x128xf32>
    %cst_89 = arith.constant dense<0.000000e+00> : vector<16xf32>
    %169 = vector.multi_reduction <add>, %168, %cst_89 [1] : vector<16x128xf32> to vector<16xf32>
    %170 = vector.shape_cast %169 : vector<16xf32> to vector<16x1xf32>
    %cst_90 = arith.constant 1.000000e-24 : f32
    %171 = vector.broadcast %cst_90 : f32 to vector<16x1xf32>
    %172 = arith.maximumf %170, %171 : vector<16x1xf32>
    %173 = math.rsqrt %172 : vector<16x1xf32>
    %174 = vector.broadcast %173 : vector<16x1xf32> to vector<16x128xf32>
    %175 = arith.mulf %156, %174 : vector<16x128xf32>
    %c0_91 = arith.constant 0 : index
    %c0_92 = arith.constant 0 : index
    %c0_93 = arith.constant 0 : index
    %176 = vector.load %arg8[%c0_91, %c0_92, %c0_93] : memref<1x16x128xf32, #tpu.memory_space<vmem>>, vector<1x16x128xf32>
    %177 = vector.shape_cast %176 : vector<1x16x128xf32> to vector<16x128xf32>
    %178 = vector.shape_cast %175 : vector<16x128xf32> to vector<1x16x128xf32>
    tpu.vector_store %arg8[%c0_91, %c0_92, %c0_93], %178 {strides = array<i32>} : memref<1x16x128xf32, #tpu.memory_space<vmem>>, vector<1x16x128xf32>,
    return
  }
  func.func @transform_0(%arg0: i32) -> (i32, i32, i32) {
    %c0_i32 = arith.constant 0 : i32
    %c0_i32_0 = arith.constant 0 : i32
    %c0_i32_1 = arith.constant 0 : i32
    return %arg0, %c0_i32, %c0_i32_0 : i32, i32, i32
  }
  func.func @transform_1(%arg0: i32) -> (i32, i32, i32) {
    %c0_i32 = arith.constant 0 : i32
    %c0_i32_0 = arith.constant 0 : i32
    %c0_i32_1 = arith.constant 0 : i32
    return %arg0, %c0_i32, %c0_i32_0 : i32, i32, i32
  }
  func.func @transform_2(%arg0: i32) -> (i32, i32) {
    %c0_i32 = arith.constant 0 : i32
    %c0_i32_0 = arith.constant 0 : i32
    %c0_i32_1 = arith.constant 0 : i32
    return %c0_i32, %c0_i32_0 : i32, i32
  }
  func.func @transform_3(%arg0: i32) -> (i32, i32) {
    %c0_i32 = arith.constant 0 : i32
    %c0_i32_0 = arith.constant 0 : i32
    %c0_i32_1 = arith.constant 0 : i32
    return %c0_i32, %c0_i32_0 : i32, i32
  }
  func.func @transform_4(%arg0: i32) -> (i32, i32, i32) {
    %c0_i32 = arith.constant 0 : i32
    %c0_i32_0 = arith.constant 0 : i32
    %c0_i32_1 = arith.constant 0 : i32
    %c0_i32_2 = arith.constant 0 : i32
    return %c0_i32, %c0_i32_0, %c0_i32_1 : i32, i32, i32
  }
  func.func @transform_5(%arg0: i32) -> (i32, i32, i32) {
    %c0_i32 = arith.constant 0 : i32
    %c0_i32_0 = arith.constant 0 : i32
    %c0_i32_1 = arith.constant 0 : i32
    %c0_i32_2 = arith.constant 0 : i32
    return %c0_i32, %c0_i32_0, %c0_i32_1 : i32, i32, i32
  }
  func.func @transform_6(%arg0: i32) -> (i32, i32, i32) {
    %c0_i32 = arith.constant 0 : i32
    %c0_i32_0 = arith.constant 0 : i32
    %c0_i32_1 = arith.constant 0 : i32
    return %arg0, %c0_i32, %c0_i32_0 : i32, i32, i32
  }
  func.func @transform_7(%arg0: i32) -> (i32, i32, i32) {
    %c0_i32 = arith.constant 0 : i32
    %c0_i32_0 = arith.constant 0 : i32
    %c0_i32_1 = arith.constant 0 : i32
    return %arg0, %c0_i32, %c0_i32_0 : i32, i32, i32
  }
}

</mosaic_0001>

<llo_original>
// kernel: tpu_custom_call.1
$region0: #{tpu_custom_call.1}
  #allocation0 [shape = 'u32[]', space=smem, size = 0x4, offset = 0x4, fixed_abs, tag = 'smem constant byte address 0x4 - core index']
  #allocation1 [shape = 'u32[144,128]{1,0:T(1,128)}', space=vmem, size = 0x12000, scoped, tag = 'internal scratch']
  %s0 = inlined_call_operand.hbm [shape: f32[2,16,16], index: 0, kind: input, shape index: {}]
  %s1 = inlined_call_operand.hbm [shape: f32[2,16,128], index: 1, kind: input, shape index: {}]
  %s2 = inlined_call_operand.hbm [shape: f32[128,256], index: 2, kind: input, shape index: {}]
  %s3 = inlined_call_operand.vmem [shape: f32[1,256], index: 3, kind: input, shape index: {}]
  %s4 = inlined_call_operand.hbm [shape: f32[6,128,128], index: 4, kind: input, shape index: {}]
  %s5 = inlined_call_operand.vmem [shape: f32[12,1,128], index: 5, kind: input, shape index: {}]
  %s6 = inlined_call_operand.hbm [shape: f32[2,16,128], index: 6, kind: output, shape index: {0}]
  %s7 = inlined_call_operand.hbm [shape: f32[2,16,128], index: 7, kind: output, shape index: {1}]
  %8 = xla_tuple %s6, %s7
  %s9 = sld [smem:[#allocation0]]
  $region81: #{tpu_custom_call.1} parent=0
    _
  %s11 = ssub.s32 1, %s9
  %s12 = scalar_select 0, %s11, %s9
  $region1: #{tpu_custom_call.1} parent=0
    #allocation2 [shape = 'u8[16384]{0}', space=vmem, size = 0x4000, scoped, tag = 'input window, operand 0']
    #allocation3 [shape = 's32[2]{0}', space=sflag, size = 0x8, scoped, tag = 'scoped memory for tpu_custom_call.1']
    #allocation4 [shape = 's32[2]{0}', space=sflag, size = 0x8, scoped, tag = 'scoped memory for tpu_custom_call.1']
    #allocation5 [shape = 'u8[16384]{0}', space=vmem, size = 0x4000, scoped, tag = 'input window, operand 1']
    #allocation6 [shape = 's32[2]{0}', space=sflag, size = 0x8, scoped, tag = 'scoped memory for tpu_custom_call.1']
    #allocation7 [shape = 'u8[131072]{0}', space=vmem, size = 0x20000, scoped, tag = 'input window, operand 2, single buffered']
    #allocation8 [shape = 'u8[393216]{0}', space=vmem, size = 0x60000, scoped, tag = 'input window, operand 4, single buffered']
    #allocation9 [shape = 's32[1]{0}', space=sflag, size = 0x4, scoped, tag = 'scoped memory for tpu_custom_call.1']
    #allocation10 [shape = 'u8[16384]{0}', space=vmem, size = 0x4000, scoped, tag = 'output window, operand 0']
    #allocation11 [shape = 'u8[16384]{0}', space=vmem, size = 0x4000, scoped, tag = 'output window, operand 1']
    #allocation12 [shape = 's32[2]{0}', space=sflag, size = 0x8, scoped, tag = 'scoped memory for tpu_custom_call.1']
    %13 = vsyncpa [#allocation3], 0
    %s14 = scalar_lea.sflag [#allocation3], 1
    %15 = vsyncpa %s14, 0
    %16 = vsyncpa [#allocation6], 0
    %s17 = scalar_lea.sflag [#allocation6], 1
    %18 = vsyncpa %s17, 0
    %19 = vsyncpa [#allocation9], 0
    %20 = vsyncpa [#allocation4], 0
    %s21 = scalar_lea.sflag [#allocation4], 1
    %22 = vsyncpa %s21, 0
    %23 = vsyncpa [#allocation12], 0
    %s24 = scalar_lea.sflag [#allocation12], 1
    %25 = vsyncpa %s24, 0
    loop: start=0, step=1, limit=4
    $region2: #{tpu_custom_call.1} parent=1 // loop_pre_header
      _
    $region3: #{tpu_custom_call.1} parent=1 // loop_header
      %s27 = sphi 0, %s31
      %p28 = scmp.ge.s32.totalorder %s27, 4
      %s37 = sphi 0, %s39
      %s40 = sphi 0, %s37
      %s41 = sphi 0, %s40
      %s57 = sphi 0, %s41
      %s63 = sphi 0, %s65
      %s66 = sphi 0, %s63
      %s67 = sphi 0, %s66
      %s83 = sphi 0, %s67
      %s87 = sphi 0, %s87
      %s89 = sphi 0, %s87
      %s90 = sphi 0, %s89
      %s104 = sphi 0, %s90
      %s108 = sphi 0, %s108
      %s110 = sphi 0, %s108
      %s111 = sphi 0, %s110
      %s125 = sphi 0, %s111
      %s129 = sphi 0, %s129
      %s131 = sphi 0, %s129
      %s132 = sphi 0, %s131
      %s146 = sphi 0, %s132
      %s150 = sphi 0, %s150
      %s152 = sphi 0, %s150
      %s153 = sphi 0, %s152
      %s167 = sphi 0, %s153
      %s173 = sphi 0, %s175
      %s176 = sphi 0, %s173
      %s177 = sphi 0, %s176
      %s193 = sphi 0, %s177
      %s199 = sphi 0, %s201
      %s202 = sphi 0, %s199
      %s203 = sphi 0, %s202
      %s219 = sphi 0, %s203
    $region4: #{tpu_custom_call.1} parent=1 // loop_header_branch
      %30 = sbr.rel (%p28) target = $region8
    $region5: #{tpu_custom_call.1} parent=1 // loop_body
      %s32 = ssub.s32 %s27, 1
      %s33 = ssub.s32 %s27, 2
      %s34 = sadd.s32 %s27, 1
      %s35 = ssub.s32 %s27, %s34
      %p36 = scmp.eq.s32.totalorder %s35, 0
      %s38 = sadd.s32 %s37, 1
      %s39 = scalar_select %p36, %s37, %s38
      %p42 = pneg %p36
      %p43 = scmp.eq.s32.totalorder %s27, 1
      %p44 = por %p42, %p43
      %p45 = scmp.ne.s32.totalorder %s37, %s40
      %p46 = scmp.eq.s32.totalorder %s27, 0
      %p47 = por %p45, %p46
      %p48 = scmp.ne.s32.totalorder %s37, %s40
      %p49 = scmp.eq.s32.totalorder %s32, 1
      %p50 = por %p48, %p49
      %p51 = scmp.ne.s32.totalorder %s40, %s41
      %p52 = scmp.eq.s32.totalorder %s32, 0
      %p53 = por %p51, %p52
      %p54 = scmp.ne.s32.totalorder %s40, %s41
      %p55 = scmp.eq.s32.totalorder %s33, 1
      %p56 = por %p54, %p55
      %p58 = scmp.ne.s32.totalorder %s41, %s57
      %p59 = scmp.eq.s32.totalorder %s33, 0
      %p60 = por %p58, %p59
      %s61 = ssub.s32 %s27, %s34
      %p62 = scmp.eq.s32.totalorder %s61, 0
      %s64 = sadd.s32 %s63, 1
      %s65 = scalar_select %p62, %s63, %s64
      %p68 = pneg %p62
      %p69 = scmp.eq.s32.totalorder %s27, 1
      %p70 = por %p68, %p69
      %p71 = scmp.ne.s32.totalorder %s63, %s66
      %p72 = scmp.eq.s32.totalorder %s27, 0
      %p73 = por %p71, %p72
      %p74 = scmp.ne.s32.totalorder %s63, %s66
      %p75 = scmp.eq.s32.totalorder %s32, 1
      %p76 = por %p74, %p75
      %p77 = scmp.ne.s32.totalorder %s66, %s67
      %p78 = scmp.eq.s32.totalorder %s32, 0
      %p79 = por %p77, %p78
      %p80 = scmp.ne.s32.totalorder %s66, %s67
      %p81 = scmp.eq.s32.totalorder %s33, 1
      %p82 = por %p80, %p81
      %p84 = scmp.ne.s32.totalorder %s67, %s83
      %p85 = scmp.eq.s32.totalorder %s33, 0
      %p86 = por %p84, %p85
      %s88 = sadd.s32 %s87, 1
      %p91 = scmp.eq.s32.totalorder %s27, 1
      %p92 = scmp.ne.s32.totalorder %s87, %s89
      %p93 = scmp.eq.s32.totalorder %s27, 0
      %p94 = por %p92, %p93
      %p95 = scmp.ne.s32.totalorder %s87, %s89
      %p96 = scmp.eq.s32.totalorder %s32, 1
      %p97 = por %p95, %p96
      %p98 = scmp.ne.s32.totalorder %s89, %s90
      %p99 = scmp.eq.s32.totalorder %s32, 0
      %p100 = por %p98, %p99
      %p101 = scmp.ne.s32.totalorder %s89, %s90
      %p102 = scmp.eq.s32.totalorder %s33, 1
      %p103 = por %p101, %p102
      %p105 = scmp.ne.s32.totalorder %s90, %s104
      %p106 = scmp.eq.s32.totalorder %s33, 0
      %p107 = por %p105, %p106
      %s109 = sadd.s32 %s108, 1
      %p112 = scmp.eq.s32.totalorder %s27, 1
      %p113 = scmp.ne.s32.totalorder %s108, %s110
      %p114 = scmp.eq.s32.totalorder %s27, 0
      %p115 = por %p113, %p114
      %p116 = scmp.ne.s32.totalorder %s108, %s110
      %p117 = scmp.eq.s32.totalorder %s32, 1
      %p118 = por %p116, %p117
      %p119 = scmp.ne.s32.totalorder %s110, %s111
      %p120 = scmp.eq.s32.totalorder %s32, 0
      %p121 = por %p119, %p120
      %p122 = scmp.ne.s32.totalorder %s110, %s111
      %p123 = scmp.eq.s32.totalorder %s33, 1
      %p124 = por %p122, %p123
      %p126 = scmp.ne.s32.totalorder %s111, %s125
      %p127 = scmp.eq.s32.totalorder %s33, 0
      %p128 = por %p126, %p127
      %s130 = sadd.s32 %s129, 1
      %p133 = scmp.eq.s32.totalorder %s27, 1
      %p134 = scmp.ne.s32.totalorder %s129, %s131
      %p135 = scmp.eq.s32.totalorder %s27, 0
      %p136 = por %p134, %p135
      %p137 = scmp.ne.s32.totalorder %s129, %s131
      %p138 = scmp.eq.s32.totalorder %s32, 1
      %p139 = por %p137, %p138
      %p140 = scmp.ne.s32.totalorder %s131, %s132
      %p141 = scmp.eq.s32.totalorder %s32, 0
      %p142 = por %p140, %p141
      %p143 = scmp.ne.s32.totalorder %s131, %s132
      %p144 = scmp.eq.s32.totalorder %s33, 1
      %p145 = por %p143, %p144
      %p147 = scmp.ne.s32.totalorder %s132, %s146
      %p148 = scmp.eq.s32.totalorder %s33, 0
      %p149 = por %p147, %p148
      %s151 = sadd.s32 %s150, 1
      %p154 = scmp.eq.s32.totalorder %s27, 1
      %p155 = scmp.ne.s32.totalorder %s150, %s152
      %p156 = scmp.eq.s32.totalorder %s27, 0
      %p157 = por %p155, %p156
      %p158 = scmp.ne.s32.totalorder %s150, %s152
      %p159 = scmp.eq.s32.totalorder %s32, 1
      %p160 = por %p158, %p159
      %p161 = scmp.ne.s32.totalorder %s152, %s153
      %p162 = scmp.eq.s32.totalorder %s32, 0
      %p163 = por %p161, %p162
      %p164 = scmp.ne.s32.totalorder %s152, %s153
      %p165 = scmp.eq.s32.totalorder %s33, 1
      %p166 = por %p164, %p165
      %p168 = scmp.ne.s32.totalorder %s153, %s167
      %p169 = scmp.eq.s32.totalorder %s33, 0
      %p170 = por %p168, %p169
      %s171 = ssub.s32 %s27, %s34
      %p172 = scmp.eq.s32.totalorder %s171, 0
      %s174 = sadd.s32 %s173, 1
      %s175 = scalar_select %p172, %s173, %s174
      %p178 = pneg %p172
      %p179 = scmp.eq.s32.totalorder %s27, 1
      %p180 = por %p178, %p179
      %p181 = scmp.ne.s32.totalorder %s173, %s176
      %p182 = scmp.eq.s32.totalorder %s27, 0
      %p183 = por %p181, %p182
      %p184 = scmp.ne.s32.totalorder %s173, %s176
      %p185 = scmp.eq.s32.totalorder %s32, 1
      %p186 = por %p184, %p185
      %p187 = scmp.ne.s32.totalorder %s176, %s177
      %p188 = scmp.eq.s32.totalorder %s32, 0
      %p189 = por %p187, %p188
      %p190 = scmp.ne.s32.totalorder %s176, %s177
      %p191 = scmp.eq.s32.totalorder %s33, 1
      %p192 = por %p190, %p191
      %p194 = scmp.ne.s32.totalorder %s177, %s193
      %p195 = scmp.eq.s32.totalorder %s33, 0
      %p196 = por %p194, %p195
      %s197 = ssub.s32 %s27, %s34
      %p198 = scmp.eq.s32.totalorder %s197, 0
      %s200 = sadd.s32 %s199, 1
      %s201 = scalar_select %p198, %s199, %s200
      %p204 = pneg %p198
      %p205 = scmp.eq.s32.totalorder %s27, 1
      %p206 = por %p204, %p205
      %p207 = scmp.ne.s32.totalorder %s199, %s202
      %p208 = scmp.eq.s32.totalorder %s27, 0
      %p209 = por %p207, %p208
      %p210 = scmp.ne.s32.totalorder %s199, %s202
      %p211 = scmp.eq.s32.totalorder %s32, 1
      %p212 = por %p210, %p211
      %p213 = scmp.ne.s32.totalorder %s202, %s203
      %p214 = scmp.eq.s32.totalorder %s32, 0
      %p215 = por %p213, %p214
      %p216 = scmp.ne.s32.totalorder %s202, %s203
      %p217 = scmp.eq.s32.totalorder %s33, 1
      %p218 = por %p216, %p217
      %p220 = scmp.ne.s32.totalorder %s203, %s219
      %p221 = scmp.eq.s32.totalorder %s33, 0
      %p222 = por %p220, %p221
      %p223 = scmp.le.s32.totalorder 1, %s27
      %p224 = scmp.lt.s32.totalorder %s27, 3
      %p225 = pnand %p223, %p224
      %p226 = pneg %p225
      // Predicated region
      $region9: #{tpu_custom_call.1} parent=5 // pred_check
        _
      $region10: #{tpu_custom_call.1} parent=5 // pred_check_branch
        %228 = sbr.rel (%p225) target = $region12
      $region11: #{tpu_custom_call.1} parent=5 // pred_region
        %s229 = ssub.s32 %s27, 1
        // Predicated region
        $region13: #{tpu_custom_call.1} parent=11 // pred_check
          %p230 = pneg %p100
        $region14: #{tpu_custom_call.1} parent=11 // pred_check_branch
          %232 = sbr.rel (%p230) target = $region16
        $region15: #{tpu_custom_call.1} parent=11 // pred_region
          %s234 = ssub.s32 4096, 4096
          %235 = vsyncadd [#allocation6], %s234
          %s236 = sshll.u32 [#allocation7], 4
          %s237 = int_to_ptr.vmem [resolvable:$true] %s236
          %242 = dma.hbm_to_vmem [thread:$0]  %s2, 4096, %s237, [#allocation6], 256, 256, 16
        $region16: #{tpu_custom_call.1} parent=11 // pred_fallthru
          _
        // Predicated region
        $region17: #{tpu_custom_call.1} parent=11 // pred_check
          %p243 = pneg %p121
        $region18: #{tpu_custom_call.1} parent=11 // pred_check_branch
          %245 = sbr.rel (%p243) target = $region20
        $region19: #{tpu_custom_call.1} parent=11 // pred_region
          _
        $region20: #{tpu_custom_call.1} parent=11 // pred_fallthru
          _
        // Predicated region
        $region21: #{tpu_custom_call.1} parent=11 // pred_check
          %p246 = pneg %p142
        $region22: #{tpu_custom_call.1} parent=11 // pred_check_branch
          %248 = sbr.rel (%p246) target = $region24
        $region23: #{tpu_custom_call.1} parent=11 // pred_region
          %s250 = ssub.s32 12288, 12288
          %251 = vsyncadd [#allocation9], %s250
          %s252 = sshll.u32 [#allocation8], 4
          %s253 = int_to_ptr.vmem [resolvable:$true] %s252
          %258 = dma.hbm_to_vmem [thread:$0]  %s4, 12288, %s253, [#allocation9], 128, 128, 8
        $region24: #{tpu_custom_call.1} parent=11 // pred_fallthru
          _
        // Predicated region
        $region25: #{tpu_custom_call.1} parent=11 // pred_check
          %p259 = pneg %p163
        $region26: #{tpu_custom_call.1} parent=11 // pred_check_branch
          %261 = sbr.rel (%p259) target = $region28
        $region27: #{tpu_custom_call.1} parent=11 // pred_region
          _
        $region28: #{tpu_custom_call.1} parent=11 // pred_fallthru
          _
      $region12: #{tpu_custom_call.1} parent=5 // pred_fallthru
        _
      %p262 = scmp.lt.s32.totalorder %s27, 2
      // Predicated region
      $region29: #{tpu_custom_call.1} parent=5 // pred_check
        %p263 = pneg %p262
      $region30: #{tpu_custom_call.1} parent=5 // pred_check_branch
        %265 = sbr.rel (%p263) target = $region32
      $region31: #{tpu_custom_call.1} parent=5 // pred_region
        // Predicated region
        $region33: #{tpu_custom_call.1} parent=31 // pred_check
          %p266 = pneg %p47
        $region34: #{tpu_custom_call.1} parent=31 // pred_check_branch
          %268 = sbr.rel (%p266) target = $region36
        $region35: #{tpu_custom_call.1} parent=31 // pred_region
          %s269 = sand.u32 %s37, 1
          %s270 = scalar_lea.sflag [#allocation3], %s269
          %s271 = sand.u32 %s37, 1
          %s272 = smul.addr %s271, 16
          %s273 = scalar_lea.vmem [#allocation2], %s272
          %s275 = ssub.s32 256, 256
          %276 = vsyncadd %s270, %s275
          %s277 = smul.addr %s27, 2
          %s278 = smul.addr %s277, 128
          %s279 = scalar_lea.hbm %s0, %s278
          %s280 = sshll.u32 %s273, 4
          %s281 = int_to_ptr.vmem [resolvable:$true] %s280
          %286 = dma.hbm_to_vmem [thread:$0]  %s279, 256, %s281, %s270, 128, 128, 8
        $region36: #{tpu_custom_call.1} parent=31 // pred_fallthru
          _
        // Predicated region
        $region37: #{tpu_custom_call.1} parent=31 // pred_check
          %p287 = pneg %p73
        $region38: #{tpu_custom_call.1} parent=31 // pred_check_branch
          %289 = sbr.rel (%p287) target = $region40
        $region39: #{tpu_custom_call.1} parent=31 // pred_region
          %s290 = sand.u32 %s27, 1
          %s291 = scalar_lea.sflag [#allocation6], %s290
          %s292 = sand.u32 %s63, 1
          %s293 = smul.addr %s292, 16
          %s294 = scalar_lea.vmem [#allocation5], %s293
          %s296 = ssub.s32 256, 256
          %297 = vsyncadd %s291, %s296
          %s298 = smul.addr %s27, 2
          %s299 = smul.addr %s298, 128
          %s300 = scalar_lea.hbm %s1, %s299
          %s301 = sshll.u32 %s294, 4
          %s302 = int_to_ptr.vmem [resolvable:$true] %s301
          %307 = dma.hbm_to_vmem [thread:$0]  %s300, 256, %s302, %s291, 128, 128, 8
        $region40: #{tpu_custom_call.1} parent=31 // pred_fallthru
          _
      $region32: #{tpu_custom_call.1} parent=5 // pred_fallthru
        _
      %p308 = scmp.le.s32.totalorder 1, %s27
      %p309 = scmp.lt.s32.totalorder %s27, 3
      %p310 = pnand %p308, %p309
      %p311 = pneg %p310
      // Predicated region
      $region41: #{tpu_custom_call.1} parent=5 // pred_check
        _
      $region42: #{tpu_custom_call.1} parent=5 // pred_check_branch
        %313 = sbr.rel (%p310) target = $region44
      $region43: #{tpu_custom_call.1} parent=5 // pred_region
        %s314 = ssub.s32 %s27, 1
        %s315 = sand.u32 %s40, 1
        %s316 = scalar_lea.sflag [#allocation3], %s315
        %s317 = sand.u32 %s40, 1
        %s318 = smul.addr %s317, 16
        %s319 = scalar_lea.vmem [#allocation2], %s318
        // Predicated region
        $region45: #{tpu_custom_call.1} parent=43 // pred_check
          %p320 = pneg %p53
        $region46: #{tpu_custom_call.1} parent=43 // pred_check_branch
          %322 = sbr.rel (%p320) target = $region48
        $region47: #{tpu_custom_call.1} parent=43 // pred_region
          %323 = dma.done %s316, 256
        $region48: #{tpu_custom_call.1} parent=43 // pred_fallthru
          _
        %s324 = sand.u32 %s32, 1
        %s325 = scalar_lea.sflag [#allocation6], %s324
        %s326 = sand.u32 %s66, 1
        %s327 = smul.addr %s326, 16
        %s328 = scalar_lea.vmem [#allocation5], %s327
        // Predicated region
        $region49: #{tpu_custom_call.1} parent=43 // pred_check
          %p329 = pneg %p79
        $region50: #{tpu_custom_call.1} parent=43 // pred_check_branch
          %331 = sbr.rel (%p329) target = $region52
        $region51: #{tpu_custom_call.1} parent=43 // pred_region
          %332 = dma.done %s325, 256
        $region52: #{tpu_custom_call.1} parent=43 // pred_fallthru
          _
        // Predicated region
        $region53: #{tpu_custom_call.1} parent=43 // pred_check
          %p333 = pneg %p100
        $region54: #{tpu_custom_call.1} parent=43 // pred_check_branch
          %335 = sbr.rel (%p333) target = $region56
        $region55: #{tpu_custom_call.1} parent=43 // pred_region
          %336 = dma.done [#allocation6], 4096
        $region56: #{tpu_custom_call.1} parent=43 // pred_fallthru
          _
        // Predicated region
        $region57: #{tpu_custom_call.1} parent=43 // pred_check
          %p337 = pneg %p142
        $region58: #{tpu_custom_call.1} parent=43 // pred_check_branch
          %339 = sbr.rel (%p337) target = $region60
        $region59: #{tpu_custom_call.1} parent=43 // pred_region
          %340 = dma.done [#allocation9], 12288
        $region60: #{tpu_custom_call.1} parent=43 // pred_fallthru
          _
        %s341 = sand.u32 %s40, 1
        %s342 = scalar_lea.sflag [#allocation3], %s341
        %s343 = sand.u32 %s40, 1
        %s344 = smul.addr %s343, 16
        %s345 = scalar_lea.vmem [#allocation2], %s344
        %p346 = pneg %p53
        %p347 = pneg %p50
        %s348 = sand.u32 %s32, 1
        %s349 = scalar_lea.sflag [#allocation6], %s348
        %s350 = sand.u32 %s66, 1
        %s351 = smul.addr %s350, 16
        %s352 = scalar_lea.vmem [#allocation5], %s351
        %p353 = pneg %p79
        %p354 = pneg %p76
        %p355 = pneg %p100
        %p356 = pneg %p97
        %p357 = pneg %p121
        %p358 = pneg %p118
        %p359 = pneg %p142
        %p360 = pneg %p139
        %p361 = pneg %p163
        %p362 = pneg %p160
        %p363 = pneg %p189
        %p364 = pneg %p186
        %s365 = sand.u32 %s176, 1
        %s366 = scalar_lea.sflag [#allocation4], %s365
        %s367 = sand.u32 %s176, 1
        %s368 = smul.addr %s367, 16
        %s369 = scalar_lea.vmem [#allocation10], %s368
        %p370 = pneg %p215
        %p371 = pneg %p212
        %s372 = sand.u32 %s202, 1
        %s373 = scalar_lea.sflag [#allocation12], %s372
        %s374 = sand.u32 %s202, 1
        %s375 = smul.addr %s374, 16
        %s376 = scalar_lea.vmem [#allocation11], %s375
        %v377 = vld [vmem:[%s319] sm:$0xff]
        %v378 = vld [vmem:[%s319 + $0x8] sm:$0xff]
        %v379 = vld [vmem:[%s328] sm:$0xff]
        %v380 = vld [vmem:[%s328 + $0x8] sm:$0xff]
        %v381 = vld [vmem:[#allocation7] sm:$0xff]
        %v382 = vld [vmem:[#allocation7 + $0x8] sm:$0xff]
        %v383 = vld [vmem:[#allocation7 + $0x10] sm:$0xff]
        %v384 = vld [vmem:[#allocation7 + $0x18] sm:$0xff]
        %v385 = vld [vmem:[#allocation7 + $0x20] sm:$0xff]
        %v386 = vld [vmem:[#allocation7 + $0x28] sm:$0xff]
        %v387 = vld [vmem:[#allocation7 + $0x30] sm:$0xff]
        %v388 = vld [vmem:[#allocation7 + $0x38] sm:$0xff]
        %v389 = vld [vmem:[#allocation7 + $0x40] sm:$0xff]
        %v390 = vld [vmem:[#allocation7 + $0x48] sm:$0xff]
        %v391 = vld [vmem:[#allocation7 + $0x50] sm:$0xff]
        %v392 = vld [vmem:[#allocation7 + $0x58] sm:$0xff]
        %v393 = vld [vmem:[#allocation7 + $0x60] sm:$0xff]
        %v394 = vld [vmem:[#allocation7 + $0x68] sm:$0xff]
        %v395 = vld [vmem:[#allocation7 + $0x70] sm:$0xff]
        %v396 = vld [vmem:[#allocation7 + $0x78] sm:$0xff]
        %v397 = vld [vmem:[#allocation7 + $0x80] sm:$0xff]
        %v398 = vld [vmem:[#allocation7 + $0x88] sm:$0xff]
        %v399 = vld [vmem:[#allocation7 + $0x90] sm:$0xff]
        %v400 = vld [vmem:[#allocation7 + $0x98] sm:$0xff]
        %v401 = vld [vmem:[#allocation7 + $0xa0] sm:$0xff]
        %v402 = vld [vmem:[#allocation7 + $0xa8] sm:$0xff]
        %v403 = vld [vmem:[#allocation7 + $0xb0] sm:$0xff]
        %v404 = vld [vmem:[#allocation7 + $0xb8] sm:$0xff]
        %v405 = vld [vmem:[#allocation7 + $0xc0] sm:$0xff]
        %v406 = vld [vmem:[#allocation7 + $0xc8] sm:$0xff]
        %v407 = vld [vmem:[#allocation7 + $0xd0] sm:$0xff]
        %v408 = vld [vmem:[#allocation7 + $0xd8] sm:$0xff]
        %v409 = vld [vmem:[#allocation7 + $0xe0] sm:$0xff]
        %v410 = vld [vmem:[#allocation7 + $0xe8] sm:$0xff]
        %v411 = vld [vmem:[#allocation7 + $0xf0] sm:$0xff]
        %v412 = vld [vmem:[#allocation7 + $0xf8] sm:$0xff]
        %413 = vmatprep.subr.mxu0 %v382
        %414 = vmatpush1.msra.mxu0 %v381
        %415 = vmatprep.subr.mxu0 %v384
        %416 = vmatpush1.msra.mxu0 %v383
        %417 = vmatprep.subr.mxu0 %v386
        %418 = vmatpush1.msra.mxu0 %v385
        %419 = vmatprep.subr.mxu0 %v388
        %420 = vmatpush1.msra.mxu0 %v387
        %421 = vmatprep.subr.mxu0 %v390
        %422 = vmatpush1.msra.mxu0 %v389
        %423 = vmatprep.subr.mxu0 %v392
        %424 = vmatpush1.msra.mxu0 %v391
        %425 = vmatprep.subr.mxu0 %v394
        %426 = vmatpush1.msra.mxu0 %v393
        %427 = vmatprep.subr.mxu0 %v396
        %428 = vmatpush1.msra.mxu0 %v395
        %429 = vmatprep.subr.mxu0 %v398
        %430 = vmatpush1.msra.mxu0 %v397
        %431 = vmatprep.subr.mxu0 %v400
        %432 = vmatpush1.msra.mxu0 %v399
        %433 = vmatprep.subr.mxu0 %v402
        %434 = vmatpush1.msra.mxu0 %v401
        %435 = vmatprep.subr.mxu0 %v404
        %436 = vmatpush1.msra.mxu0 %v403
        %437 = vmatprep.subr.mxu0 %v406
        %438 = vmatpush1.msra.mxu0 %v405
        %439 = vmatprep.subr.mxu0 %v408
        %440 = vmatpush1.msra.mxu0 %v407
        %441 = vmatprep.subr.mxu0 %v410
        %442 = vmatpush1.msra.mxu0 %v409
        %443 = vmatprep.subr.mxu0 %v412
        %444 = vmatpush1.msra.mxu0 %v411
        %445 = vmatprep.subr.mxu0 0.0
        %446 = vmatpush1.msra.mxu0 0.0
        %447 = vmatprep.subr.mxu0 0.0
        %448 = vmatpush1.msra.mxu0 0.0
        %449 = vmatprep.subr.mxu0 0.0
        %450 = vmatpush1.msra.mxu0 0.0
        %451 = vmatprep.subr.mxu0 0.0
        %452 = vmatpush1.msra.mxu0 0.0
        %453 = vmatprep.subr.mxu0 0.0
        %454 = vmatpush1.msra.mxu0 0.0
        %455 = vmatprep.subr.mxu0 0.0
        %456 = vmatpush1.msra.mxu0 0.0
        %457 = vmatprep.subr.mxu0 0.0
        %458 = vmatpush1.msra.mxu0 0.0
        %459 = vmatprep.subr.mxu0 0.0
        %460 = vmatpush1.msra.mxu0 0.0
        %461 = vmatprep.subr.mxu0 0.0
        %462 = vmatpush1.msra.mxu0 0.0
        %463 = vmatprep.subr.mxu0 0.0
        %464 = vmatpush1.msra.mxu0 0.0
        %465 = vmatprep.subr.mxu0 0.0
        %466 = vmatpush1.msra.mxu0 0.0
        %467 = vmatprep.subr.mxu0 0.0
        %468 = vmatpush1.msra.mxu0 0.0
        %469 = vmatprep.subr.mxu0 0.0
        %470 = vmatpush1.msra.mxu0 0.0
        %471 = vmatprep.subr.mxu0 0.0
        %472 = vmatpush1.msra.mxu0 0.0
        %473 = vmatprep.subr.mxu0 0.0
        %474 = vmatpush1.msra.mxu0 0.0
        %475 = vmatprep.subr.mxu0 0.0
        %476 = vmatpush1.msra.mxu0 0.0
        %477 = vmatprep.mubr.f32.mxu0 0.0
        %478 = vmatmul.mubr.f32.gmra.mrb[0].mxu0 %v379
        %v479 = vpop.f32.mrb[0].mxu0
        %v480 = vadd.f32 0.0, %v479
        %v481 = vpop.f32.mrb[0].mxu0
        %v482 = vadd.f32 0.0, %v481
        %483 = vmatprep.mubr.f32.mxu0 0.0
        %484 = vmatmul.mubr.f32.gmra.mrb[0].mxu0 %v380
        %v485 = vpop.f32.mrb[0].mxu0
        %v486 = vadd.f32 0.0, %v485
        %v487 = vpop.f32.mrb[0].mxu0
        %v488 = vadd.f32 0.0, %v487
        %489 = vdwg.mxu0
        %v490 = vld [vmem:[%s3] sm:$0x3]
        %v492 = vlaneseq
        %v493 = vshrl.u32 %v492, 7
        %v494 = vsub.s32 0, %v493
        %v495 = vrot.slane %v490, %v494
        %v496 = vlaneseq
        %v497 = vshrl.u32 %v496, 7
        %v498 = vsub.s32 1, %v497
        %v499 = vrot.slane %v490, %v498
        %vm502 = vcmask 130048
        %v504 = vsel %vm502, %v377, 0
        %v507 = vsel %vm502, %v378, 0
        %509 = vmatprep.subr.mxu0 %v482
        %510 = vmatpush1.msra.mxu0 %v480
        %511 = vmatprep.subr.mxu0 %v488
        %512 = vmatpush1.msra.mxu0 %v486
        %513 = vmatprep.subr.mxu0 0.0
        %514 = vmatpush1.msra.mxu0 0.0
        %515 = vmatprep.subr.mxu0 0.0
        %516 = vmatpush1.msra.mxu0 0.0
        %517 = vmatprep.subr.mxu0 0.0
        %518 = vmatpush1.msra.mxu0 0.0
        %519 = vmatprep.subr.mxu0 0.0
        %520 = vmatpush1.msra.mxu0 0.0
        %521 = vmatprep.subr.mxu0 0.0
        %522 = vmatpush1.msra.mxu0 0.0
        %523 = vmatprep.subr.mxu0 0.0
        %524 = vmatpush1.msra.mxu0 0.0
        %525 = vmatprep.subr.mxu0 0.0
        %526 = vmatpush1.msra.mxu0 0.0
        %527 = vmatprep.subr.mxu0 0.0
        %528 = vmatpush1.msra.mxu0 0.0
        %529 = vmatprep.subr.mxu0 0.0
        %530 = vmatpush1.msra.mxu0 0.0
        %531 = vmatprep.subr.mxu0 0.0
        %532 = vmatpush1.msra.mxu0 0.0
        %533 = vmatprep.subr.mxu0 0.0
        %534 = vmatpush1.msra.mxu0 0.0
        %535 = vmatprep.subr.mxu0 0.0
        %536 = vmatpush1.msra.mxu0 0.0
        %537 = vmatprep.subr.mxu0 0.0
        %538 = vmatpush1.msra.mxu0 0.0
        %539 = vmatprep.subr.mxu0 0.0
        %540 = vmatpush1.msra.mxu0 0.0
        %541 = vmatprep.subr.mxu0 0.0
        %542 = vmatpush1.msra.mxu0 0.0
        %543 = vmatprep.subr.mxu0 0.0
        %544 = vmatpush1.msra.mxu0 0.0
        %545 = vmatprep.subr.mxu0 0.0
        %546 = vmatpush1.msra.mxu0 0.0
        %547 = vmatprep.subr.mxu0 0.0
        %548 = vmatpush1.msra.mxu0 0.0
        %549 = vmatprep.subr.mxu0 0.0
        %550 = vmatpush1.msra.mxu0 0.0
        %551 = vmatprep.subr.mxu0 0.0
        %552 = vmatpush1.msra.mxu0 0.0
        %553 = vmatprep.subr.mxu0 0.0
        %554 = vmatpush1.msra.mxu0 0.0
        %555 = vmatprep.subr.mxu0 0.0
        %556 = vmatpush1.msra.mxu0 0.0
        %557 = vmatprep.subr.mxu0 0.0
        %558 = vmatpush1.msra.mxu0 0.0
        %559 = vmatprep.subr.mxu0 0.0
        %560 = vmatpush1.msra.mxu0 0.0
        %561 = vmatprep.subr.mxu0 0.0
        %562 = vmatpush1.msra.mxu0 0.0
        %563 = vmatprep.subr.mxu0 0.0
        %564 = vmatpush1.msra.mxu0 0.0
        %565 = vmatprep.subr.mxu0 0.0
        %566 = vmatpush1.msra.mxu0 0.0
        %567 = vmatprep.subr.mxu0 0.0
        %568 = vmatpush1.msra.mxu0 0.0
        %569 = vmatprep.subr.mxu0 0.0
        %570 = vmatpush1.msra.mxu0 0.0
        %571 = vmatprep.subr.mxu0 0.0
        %572 = vmatpush1.msra.mxu0 0.0
        %573 = vmatprep.mubr.f32.mxu0 0.0
        %574 = vmatmul.mubr.f32.gmra.mrb[0].mxu0 %v504
        %v575 = vpop.f32.mrb[0].mxu0
        %v576 = vadd.f32 %v495, %v575
        %v577 = vpop.f32.mrb[0].mxu0
        %v578 = vadd.f32 %v499, %v577
        %579 = vmatprep.mubr.f32.mxu0 0.0
        %580 = vmatmul.mubr.f32.gmra.mrb[0].mxu0 %v507
        %v581 = vpop.f32.mrb[0].mxu0
        %v582 = vadd.f32 %v495, %v581
        %v583 = vpop.f32.mrb[0].mxu0
        %v584 = vadd.f32 %v499, %v583
        %585 = vdwg.mxu0
        %vm586 = vcmp.ge.f32.partialorder %v576, 0.0
        %vm587 = vcmp.ge.f32.partialorder %v582, 0.0
        %v588 = vmul.f32 %v576, 0.25
        %v589 = vmul.f32 %v582, 0.25
        %v590 = vsel %vm586, %v576, %v588
        %v591 = vsel %vm587, %v582, %v589
        %vm592 = vcmp.ge.f32.partialorder %v578, 0.0
        %vm593 = vcmp.ge.f32.partialorder %v584, 0.0
        %v594 = vmul.f32 %v578, 0.25
        %v595 = vmul.f32 %v584, 0.25
        %v596 = vsel %vm592, %v578, %v594
        %v597 = vsel %vm593, %v584, %v595
        %v598 = vld [vmem:[#allocation8] sm:$0xff]
        %v599 = vld [vmem:[#allocation8 + $0x8] sm:$0xff]
        %v600 = vld [vmem:[#allocation8 + $0x10] sm:$0xff]
        %v601 = vld [vmem:[#allocation8 + $0x18] sm:$0xff]
        %v602 = vld [vmem:[#allocation8 + $0x20] sm:$0xff]
        %v603 = vld [vmem:[#allocation8 + $0x28] sm:$0xff]
        %v604 = vld [vmem:[#allocation8 + $0x30] sm:$0xff]
        %v605 = vld [vmem:[#allocation8 + $0x38] sm:$0xff]
        %v606 = vld [vmem:[#allocation8 + $0x40] sm:$0xff]
        %v607 = vld [vmem:[#allocation8 + $0x48] sm:$0xff]
        %v608 = vld [vmem:[#allocation8 + $0x50] sm:$0xff]
        %v609 = vld [vmem:[#allocation8 + $0x58] sm:$0xff]
        %v610 = vld [vmem:[#allocation8 + $0x60] sm:$0xff]
        %v611 = vld [vmem:[#allocation8 + $0x68] sm:$0xff]
        %v612 = vld [vmem:[#allocation8 + $0x70] sm:$0xff]
        %v613 = vld [vmem:[#allocation8 + $0x78] sm:$0xff]
        %s614 = scalar_lea.vmem [#allocation8], 128
        %v615 = vld [vmem:[%s614] sm:$0xff]
        %v616 = vld [vmem:[%s614 + $0x8] sm:$0xff]
        %v617 = vld [vmem:[%s614 + $0x10] sm:$0xff]
        %v618 = vld [vmem:[%s614 + $0x18] sm:$0xff]
        %v619 = vld [vmem:[%s614 + $0x20] sm:$0xff]
        %v620 = vld [vmem:[%s614 + $0x28] sm:$0xff]
        %v621 = vld [vmem:[%s614 + $0x30] sm:$0xff]
        %v622 = vld [vmem:[%s614 + $0x38] sm:$0xff]
        %v623 = vld [vmem:[%s614 + $0x40] sm:$0xff]
        %v624 = vld [vmem:[%s614 + $0x48] sm:$0xff]
        %v625 = vld [vmem:[%s614 + $0x50] sm:$0xff]
        %v626 = vld [vmem:[%s614 + $0x58] sm:$0xff]
        %v627 = vld [vmem:[%s614 + $0x60] sm:$0xff]
        %v628 = vld [vmem:[%s614 + $0x68] sm:$0xff]
        %v629 = vld [vmem:[%s614 + $0x70] sm:$0xff]
        %v630 = vld [vmem:[%s614 + $0x78] sm:$0xff]
        %v631 = vld [vmem:[%s5] sm:$0x1]
        %s632 = scalar_lea.vmem %s5, 1
        %v633 = vld [vmem:[%s632] sm:$0x1]
        %s634 = scalar_lea.vmem %s5, 2
        %v635 = vld [vmem:[%s634] sm:$0x1]
        %s636 = scalar_lea.vmem %s5, 3
        %v637 = vld [vmem:[%s636] sm:$0x1]
        %v639 = vlaneseq
        %v640 = vshrl.u32 %v639, 7
        %v641 = vsub.s32 0, %v640
        %v642 = vrot.slane %v631, %v641
        %644 = vmatprep.subr.mxu0 0.0
        %645 = vmatpush1.msra.mxu0 %v598
        %646 = vmatprep.subr.mxu0 0.0
        %647 = vmatpush1.msra.mxu0 %v599
        %648 = vmatprep.subr.mxu0 0.0
        %649 = vmatpush1.msra.mxu0 %v600
        %650 = vmatprep.subr.mxu0 0.0
        %651 = vmatpush1.msra.mxu0 %v601
        %652 = vmatprep.subr.mxu0 0.0
        %653 = vmatpush1.msra.mxu0 %v602
        %654 = vmatprep.subr.mxu0 0.0
        %655 = vmatpush1.msra.mxu0 %v603
        %656 = vmatprep.subr.mxu0 0.0
        %657 = vmatpush1.msra.mxu0 %v604
        %658 = vmatprep.subr.mxu0 0.0
        %659 = vmatpush1.msra.mxu0 %v605
        %660 = vmatprep.subr.mxu0 0.0
        %661 = vmatpush1.msra.mxu0 %v606
        %662 = vmatprep.subr.mxu0 0.0
        %663 = vmatpush1.msra.mxu0 %v607
        %664 = vmatprep.subr.mxu0 0.0
        %665 = vmatpush1.msra.mxu0 %v608
        %666 = vmatprep.subr.mxu0 0.0
        %667 = vmatpush1.msra.mxu0 %v609
        %668 = vmatprep.subr.mxu0 0.0
        %669 = vmatpush1.msra.mxu0 %v610
        %670 = vmatprep.subr.mxu0 0.0
        %671 = vmatpush1.msra.mxu0 %v611
        %672 = vmatprep.subr.mxu0 0.0
        %673 = vmatpush1.msra.mxu0 %v612
        %674 = vmatprep.subr.mxu0 0.0
        %675 = vmatpush1.msra.mxu0 %v613
        %676 = vmatprep.subr.mxu0 0.0
        %677 = vmatpush1.msra.mxu0 0.0
        %678 = vmatprep.subr.mxu0 0.0
        %679 = vmatpush1.msra.mxu0 0.0
        %680 = vmatprep.subr.mxu0 0.0
        %681 = vmatpush1.msra.mxu0 0.0
        %682 = vmatprep.subr.mxu0 0.0
        %683 = vmatpush1.msra.mxu0 0.0
        %684 = vmatprep.subr.mxu0 0.0
        %685 = vmatpush1.msra.mxu0 0.0
        %686 = vmatprep.subr.mxu0 0.0
        %687 = vmatpush1.msra.mxu0 0.0
        %688 = vmatprep.subr.mxu0 0.0
        %689 = vmatpush1.msra.mxu0 0.0
        %690 = vmatprep.subr.mxu0 0.0
        %691 = vmatpush1.msra.mxu0 0.0
        %692 = vmatprep.subr.mxu0 0.0
        %693 = vmatpush1.msra.mxu0 0.0
        %694 = vmatprep.subr.mxu0 0.0
        %695 = vmatpush1.msra.mxu0 0.0
        %696 = vmatprep.subr.mxu0 0.0
        %697 = vmatpush1.msra.mxu0 0.0
        %698 = vmatprep.subr.mxu0 0.0
        %699 = vmatpush1.msra.mxu0 0.0
        %700 = vmatprep.subr.mxu0 0.0
        %701 = vmatpush1.msra.mxu0 0.0
        %702 = vmatprep.subr.mxu0 0.0
        %703 = vmatpush1.msra.mxu0 0.0
        %704 = vmatprep.subr.mxu0 0.0
        %705 = vmatpush1.msra.mxu0 0.0
        %706 = vmatprep.subr.mxu0 0.0
        %707 = vmatpush1.msra.mxu0 0.0
        %708 = vmatprep.mubr.f32.mxu0 0.0
        %709 = vmatmul.mubr.f32.gmra.mrb[0].mxu0 %v590
        %v710 = vpop.f32.mrb[0].mxu0
        %v711 = vadd.f32 %v642, %v710
        %v712 = vpop.f32.mrb[0].mxu0
        %713 = vmatprep.mubr.f32.mxu0 0.0
        %714 = vmatmul.mubr.f32.gmra.mrb[0].mxu0 %v591
        %v715 = vpop.f32.mrb[0].mxu0
        %v716 = vadd.f32 %v642, %v715
        %v717 = vpop.f32.mrb[0].mxu0
        %718 = vdwg.mxu0
        %v719 = vadd.f32 %v711, %v716
        %v720 = vrot.slane %v719, 4
        %v721 = vadd.f32 %v719, %v720
        %v722 = vrot.slane %v721, 2
        %v723 = vadd.f32 %v721, %v722
        %v724 = vrot.slane %v723, 1
        %v725 = vadd.f32 %v723, %v724
        %v726 = vrcp.pop 16.0
        %v727 = vmul.f32 %v725, %v726
        %v728 = vsub.f32 %v711, %v727
        %v729 = vsub.f32 %v716, %v727
        %v730 = vmul.f32 %v728, %v728
        %v731 = vmul.f32 %v729, %v729
        %v732 = vadd.f32 %v730, %v731
        %v733 = vrot.slane %v732, 4
        %v734 = vadd.f32 %v732, %v733
        %v735 = vrot.slane %v734, 2
        %v736 = vadd.f32 %v734, %v735
        %v737 = vrot.slane %v736, 1
        %v738 = vadd.f32 %v736, %v737
        %v739 = vmul.f32 %v738, %v726
        %v740 = vadd.f32 %v739, 1e-05
        %v741 = vrsqrt.pop %v740
        %v742 = vmul.f32 %v728, %v741
        %v743 = vmul.f32 %v729, %v741
        %v745 = vlaneseq
        %v746 = vshrl.u32 %v745, 7
        %v747 = vsub.s32 0, %v746
        %v748 = vrot.slane %v633, %v747
        %v750 = vmul.f32 %v742, %v748
        %v751 = vmul.f32 %v743, %v748
        %v753 = vlaneseq
        %v754 = vshrl.u32 %v753, 7
        %v755 = vsub.s32 0, %v754
        %v756 = vrot.slane %v635, %v755
        %v758 = vadd.f32 %v750, %v756
        %v759 = vadd.f32 %v751, %v756
        %vm760 = vcmp.ge.f32.partialorder %v758, 0.0
        %vm761 = vcmp.ge.f32.partialorder %v759, 0.0
        %v762 = vmul.f32 %v758, 0.25
        %v763 = vmul.f32 %v759, 0.25
        %v764 = vsel %vm760, %v758, %v762
        %v765 = vsel %vm761, %v759, %v763
        %v767 = vlaneseq
        %v768 = vshrl.u32 %v767, 7
        %v769 = vsub.s32 0, %v768
        %v770 = vrot.slane %v637, %v769
        %772 = vmatprep.subr.mxu0 0.0
        %773 = vmatpush1.msra.mxu0 %v615
        %774 = vmatprep.subr.mxu0 0.0
        %775 = vmatpush1.msra.mxu0 %v616
        %776 = vmatprep.subr.mxu0 0.0
        %777 = vmatpush1.msra.mxu0 %v617
        %778 = vmatprep.subr.mxu0 0.0
        %779 = vmatpush1.msra.mxu0 %v618
        %780 = vmatprep.subr.mxu0 0.0
        %781 = vmatpush1.msra.mxu0 %v619
        %782 = vmatprep.subr.mxu0 0.0
        %783 = vmatpush1.msra.mxu0 %v620
        %784 = vmatprep.subr.mxu0 0.0
        %785 = vmatpush1.msra.mxu0 %v621
        %786 = vmatprep.subr.mxu0 0.0
        %787 = vmatpush1.msra.mxu0 %v622
        %788 = vmatprep.subr.mxu0 0.0
        %789 = vmatpush1.msra.mxu0 %v623
        %790 = vmatprep.subr.mxu0 0.0
        %791 = vmatpush1.msra.mxu0 %v624
        %792 = vmatprep.subr.mxu0 0.0
        %793 = vmatpush1.msra.mxu0 %v625
        %794 = vmatprep.subr.mxu0 0.0
        %795 = vmatpush1.msra.mxu0 %v626
        %796 = vmatprep.subr.mxu0 0.0
        %797 = vmatpush1.msra.mxu0 %v627
        %798 = vmatprep.subr.mxu0 0.0
        %799 = vmatpush1.msra.mxu0 %v628
        %800 = vmatprep.subr.mxu0 0.0
        %801 = vmatpush1.msra.mxu0 %v629
        %802 = vmatprep.subr.mxu0 0.0
        %803 = vmatpush1.msra.mxu0 %v630
        %804 = vmatprep.subr.mxu0 0.0
        %805 = vmatpush1.msra.mxu0 0.0
        %806 = vmatprep.subr.mxu0 0.0
        %807 = vmatpush1.msra.mxu0 0.0
        %808 = vmatprep.subr.mxu0 0.0
        %809 = vmatpush1.msra.mxu0 0.0
        %810 = vmatprep.subr.mxu0 0.0
        %811 = vmatpush1.msra.mxu0 0.0
        %812 = vmatprep.subr.mxu0 0.0
        %813 = vmatpush1.msra.mxu0 0.0
        %814 = vmatprep.subr.mxu0 0.0
        %815 = vmatpush1.msra.mxu0 0.0
        %816 = vmatprep.subr.mxu0 0.0
        %817 = vmatpush1.msra.mxu0 0.0
        %818 = vmatprep.subr.mxu0 0.0
        %819 = vmatpush1.msra.mxu0 0.0
        %820 = vmatprep.subr.mxu0 0.0
        %821 = vmatpush1.msra.mxu0 0.0
        %822 = vmatprep.subr.mxu0 0.0
        %823 = vmatpush1.msra.mxu0 0.0
        %824 = vmatprep.subr.mxu0 0.0
        %825 = vmatpush1.msra.mxu0 0.0
        %826 = vmatprep.subr.mxu0 0.0
        %827 = vmatpush1.msra.mxu0 0.0
        %828 = vmatprep.subr.mxu0 0.0
        %829 = vmatpush1.msra.mxu0 0.0
        %830 = vmatprep.subr.mxu0 0.0
        %831 = vmatpush1.msra.mxu0 0.0
        %832 = vmatprep.subr.mxu0 0.0
        %833 = vmatpush1.msra.mxu0 0.0
        %834 = vmatprep.subr.mxu0 0.0
        %835 = vmatpush1.msra.mxu0 0.0
        %836 = vmatprep.mubr.f32.mxu0 0.0
        %837 = vmatmul.mubr.f32.gmra.mrb[0].mxu0 %v764
        %v838 = vpop.f32.mrb[0].mxu0
        %v839 = vadd.f32 %v770, %v838
        %v840 = vpop.f32.mrb[0].mxu0
        %841 = vmatprep.mubr.f32.mxu0 0.0
        %842 = vmatmul.mubr.f32.gmra.mrb[0].mxu0 %v765
        %v843 = vpop.f32.mrb[0].mxu0
        %v844 = vadd.f32 %v770, %v843
        %v845 = vpop.f32.mrb[0].mxu0
        %846 = vdwg.mxu0
        %s847 = scalar_lea.vmem [#allocation8], 256
        %v848 = vld [vmem:[%s847] sm:$0xff]
        %v849 = vld [vmem:[%s847 + $0x8] sm:$0xff]
        %v850 = vld [vmem:[%s847 + $0x10] sm:$0xff]
        %v851 = vld [vmem:[%s847 + $0x18] sm:$0xff]
        %v852 = vld [vmem:[%s847 + $0x20] sm:$0xff]
        %v853 = vld [vmem:[%s847 + $0x28] sm:$0xff]
        %v854 = vld [vmem:[%s847 + $0x30] sm:$0xff]
        %v855 = vld [vmem:[%s847 + $0x38] sm:$0xff]
        %v856 = vld [vmem:[%s847 + $0x40] sm:$0xff]
        %v857 = vld [vmem:[%s847 + $0x48] sm:$0xff]
        %v858 = vld [vmem:[%s847 + $0x50] sm:$0xff]
        %v859 = vld [vmem:[%s847 + $0x58] sm:$0xff]
        %v860 = vld [vmem:[%s847 + $0x60] sm:$0xff]
        %v861 = vld [vmem:[%s847 + $0x68] sm:$0xff]
        %v862 = vld [vmem:[%s847 + $0x70] sm:$0xff]
        %v863 = vld [vmem:[%s847 + $0x78] sm:$0xff]
        %s864 = scalar_lea.vmem [#allocation8], 384
        %v865 = vld [vmem:[%s864] sm:$0xff]
        %v866 = vld [vmem:[%s864 + $0x8] sm:$0xff]
        %v867 = vld [vmem:[%s864 + $0x10] sm:$0xff]
        %v868 = vld [vmem:[%s864 + $0x18] sm:$0xff]
        %v869 = vld [vmem:[%s864 + $0x20] sm:$0xff]
        %v870 = vld [vmem:[%s864 + $0x28] sm:$0xff]
        %v871 = vld [vmem:[%s864 + $0x30] sm:$0xff]
        %v872 = vld [vmem:[%s864 + $0x38] sm:$0xff]
        %v873 = vld [vmem:[%s864 + $0x40] sm:$0xff]
        %v874 = vld [vmem:[%s864 + $0x48] sm:$0xff]
        %v875 = vld [vmem:[%s864 + $0x50] sm:$0xff]
        %v876 = vld [vmem:[%s864 + $0x58] sm:$0xff]
        %v877 = vld [vmem:[%s864 + $0x60] sm:$0xff]
        %v878 = vld [vmem:[%s864 + $0x68] sm:$0xff]
        %v879 = vld [vmem:[%s864 + $0x70] sm:$0xff]
        %v880 = vld [vmem:[%s864 + $0x78] sm:$0xff]
        %s881 = scalar_lea.vmem %s5, 4
        %v882 = vld [vmem:[%s881] sm:$0x1]
        %s883 = scalar_lea.vmem %s5, 5
        %v884 = vld [vmem:[%s883] sm:$0x1]
        %s885 = scalar_lea.vmem %s5, 6
        %v886 = vld [vmem:[%s885] sm:$0x1]
        %s887 = scalar_lea.vmem %s5, 7
        %v888 = vld [vmem:[%s887] sm:$0x1]
        %v890 = vlaneseq
        %v891 = vshrl.u32 %v890, 7
        %v892 = vsub.s32 0, %v891
        %v893 = vrot.slane %v882, %v892
        %895 = vmatprep.subr.mxu0 0.0
        %896 = vmatpush1.msra.mxu0 %v848
        %897 = vmatprep.subr.mxu0 0.0
        %898 = vmatpush1.msra.mxu0 %v849
        %899 = vmatprep.subr.mxu0 0.0
        %900 = vmatpush1.msra.mxu0 %v850
        %901 = vmatprep.subr.mxu0 0.0
        %902 = vmatpush1.msra.mxu0 %v851
        %903 = vmatprep.subr.mxu0 0.0
        %904 = vmatpush1.msra.mxu0 %v852
        %905 = vmatprep.subr.mxu0 0.0
        %906 = vmatpush1.msra.mxu0 %v853
        %907 = vmatprep.subr.mxu0 0.0
        %908 = vmatpush1.msra.mxu0 %v854
        %909 = vmatprep.subr.mxu0 0.0
        %910 = vmatpush1.msra.mxu0 %v855
        %911 = vmatprep.subr.mxu0 0.0
        %912 = vmatpush1.msra.mxu0 %v856
        %913 = vmatprep.subr.mxu0 0.0
        %914 = vmatpush1.msra.mxu0 %v857
        %915 = vmatprep.subr.mxu0 0.0
        %916 = vmatpush1.msra.mxu0 %v858
        %917 = vmatprep.subr.mxu0 0.0
        %918 = vmatpush1.msra.mxu0 %v859
        %919 = vmatprep.subr.mxu0 0.0
        %920 = vmatpush1.msra.mxu0 %v860
        %921 = vmatprep.subr.mxu0 0.0
        %922 = vmatpush1.msra.mxu0 %v861
        %923 = vmatprep.subr.mxu0 0.0
        %924 = vmatpush1.msra.mxu0 %v862
        %925 = vmatprep.subr.mxu0 0.0
        %926 = vmatpush1.msra.mxu0 %v863
        %927 = vmatprep.subr.mxu0 0.0
        %928 = vmatpush1.msra.mxu0 0.0
        %929 = vmatprep.subr.mxu0 0.0
        %930 = vmatpush1.msra.mxu0 0.0
        %931 = vmatprep.subr.mxu0 0.0
        %932 = vmatpush1.msra.mxu0 0.0
        %933 = vmatprep.subr.mxu0 0.0
        %934 = vmatpush1.msra.mxu0 0.0
        %935 = vmatprep.subr.mxu0 0.0
        %936 = vmatpush1.msra.mxu0 0.0
        %937 = vmatprep.subr.mxu0 0.0
        %938 = vmatpush1.msra.mxu0 0.0
        %939 = vmatprep.subr.mxu0 0.0
        %940 = vmatpush1.msra.mxu0 0.0
        %941 = vmatprep.subr.mxu0 0.0
        %942 = vmatpush1.msra.mxu0 0.0
        %943 = vmatprep.subr.mxu0 0.0
        %944 = vmatpush1.msra.mxu0 0.0
        %945 = vmatprep.subr.mxu0 0.0
        %946 = vmatpush1.msra.mxu0 0.0
        %947 = vmatprep.subr.mxu0 0.0
        %948 = vmatpush1.msra.mxu0 0.0
        %949 = vmatprep.subr.mxu0 0.0
        %950 = vmatpush1.msra.mxu0 0.0
        %951 = vmatprep.subr.mxu0 0.0
        %952 = vmatpush1.msra.mxu0 0.0
        %953 = vmatprep.subr.mxu0 0.0
        %954 = vmatpush1.msra.mxu0 0.0
        %955 = vmatprep.subr.mxu0 0.0
        %956 = vmatpush1.msra.mxu0 0.0
        %957 = vmatprep.subr.mxu0 0.0
        %958 = vmatpush1.msra.mxu0 0.0
        %959 = vmatprep.mubr.f32.mxu0 0.0
        %960 = vmatmul.mubr.f32.gmra.mrb[0].mxu0 %v839
        %v961 = vpop.f32.mrb[0].mxu0
        %v962 = vadd.f32 %v893, %v961
        %v963 = vpop.f32.mrb[0].mxu0
        %964 = vmatprep.mubr.f32.mxu0 0.0
        %965 = vmatmul.mubr.f32.gmra.mrb[0].mxu0 %v844
        %v966 = vpop.f32.mrb[0].mxu0
        %v967 = vadd.f32 %v893, %v966
        %v968 = vpop.f32.mrb[0].mxu0
        %969 = vdwg.mxu0
        %v970 = vadd.f32 %v962, %v967
        %v971 = vrot.slane %v970, 4
        %v972 = vadd.f32 %v970, %v971
        %v973 = vrot.slane %v972, 2
        %v974 = vadd.f32 %v972, %v973
        %v975 = vrot.slane %v974, 1
        %v976 = vadd.f32 %v974, %v975
        %v977 = vmul.f32 %v976, %v726
        %v978 = vsub.f32 %v962, %v977
        %v979 = vsub.f32 %v967, %v977
        %v980 = vmul.f32 %v978, %v978
        %v981 = vmul.f32 %v979, %v979
        %v982 = vadd.f32 %v980, %v981
        %v983 = vrot.slane %v982, 4
        %v984 = vadd.f32 %v982, %v983
        %v985 = vrot.slane %v984, 2
        %v986 = vadd.f32 %v984, %v985
        %v987 = vrot.slane %v986, 1
        %v988 = vadd.f32 %v986, %v987
        %v989 = vmul.f32 %v988, %v726
        %v990 = vadd.f32 %v989, 1e-05
        %v991 = vrsqrt.pop %v990
        %v992 = vmul.f32 %v978, %v991
        %v993 = vmul.f32 %v979, %v991
        %v995 = vlaneseq
        %v996 = vshrl.u32 %v995, 7
        %v997 = vsub.s32 0, %v996
        %v998 = vrot.slane %v884, %v997
        %v1000 = vmul.f32 %v992, %v998
        %v1001 = vmul.f32 %v993, %v998
        %v1003 = vlaneseq
        %v1004 = vshrl.u32 %v1003, 7
        %v1005 = vsub.s32 0, %v1004
        %v1006 = vrot.slane %v886, %v1005
        %v1008 = vadd.f32 %v1000, %v1006
        %v1009 = vadd.f32 %v1001, %v1006
        %vm1010 = vcmp.ge.f32.partialorder %v1008, 0.0
        %vm1011 = vcmp.ge.f32.partialorder %v1009, 0.0
        %v1012 = vmul.f32 %v1008, 0.25
        %v1013 = vmul.f32 %v1009, 0.25
        %v1014 = vsel %vm1010, %v1008, %v1012
        %v1015 = vsel %vm1011, %v1009, %v1013
        %v1017 = vlaneseq
        %v1018 = vshrl.u32 %v1017, 7
        %v1019 = vsub.s32 0, %v1018
        %v1020 = vrot.slane %v888, %v1019
        %1022 = vmatprep.subr.mxu0 0.0
        %1023 = vmatpush1.msra.mxu0 %v865
        %1024 = vmatprep.subr.mxu0 0.0
        %1025 = vmatpush1.msra.mxu0 %v866
        %1026 = vmatprep.subr.mxu0 0.0
        %1027 = vmatpush1.msra.mxu0 %v867
        %1028 = vmatprep.subr.mxu0 0.0
        %1029 = vmatpush1.msra.mxu0 %v868
        %1030 = vmatprep.subr.mxu0 0.0
        %1031 = vmatpush1.msra.mxu0 %v869
        %1032 = vmatprep.subr.mxu0 0.0
        %1033 = vmatpush1.msra.mxu0 %v870
        %1034 = vmatprep.subr.mxu0 0.0
        %1035 = vmatpush1.msra.mxu0 %v871
        %1036 = vmatprep.subr.mxu0 0.0
        %1037 = vmatpush1.msra.mxu0 %v872
        %1038 = vmatprep.subr.mxu0 0.0
        %1039 = vmatpush1.msra.mxu0 %v873
        %1040 = vmatprep.subr.mxu0 0.0
        %1041 = vmatpush1.msra.mxu0 %v874
        %1042 = vmatprep.subr.mxu0 0.0
        %1043 = vmatpush1.msra.mxu0 %v875
        %1044 = vmatprep.subr.mxu0 0.0
        %1045 = vmatpush1.msra.mxu0 %v876
        %1046 = vmatprep.subr.mxu0 0.0
        %1047 = vmatpush1.msra.mxu0 %v877
        %1048 = vmatprep.subr.mxu0 0.0
        %1049 = vmatpush1.msra.mxu0 %v878
        %1050 = vmatprep.subr.mxu0 0.0
        %1051 = vmatpush1.msra.mxu0 %v879
        %1052 = vmatprep.subr.mxu0 0.0
        %1053 = vmatpush1.msra.mxu0 %v880
        %1054 = vmatprep.subr.mxu0 0.0
        %1055 = vmatpush1.msra.mxu0 0.0
        %1056 = vmatprep.subr.mxu0 0.0
        %1057 = vmatpush1.msra.mxu0 0.0
        %1058 = vmatprep.subr.mxu0 0.0
        %1059 = vmatpush1.msra.mxu0 0.0
        %1060 = vmatprep.subr.mxu0 0.0
        %1061 = vmatpush1.msra.mxu0 0.0
        %1062 = vmatprep.subr.mxu0 0.0
        %1063 = vmatpush1.msra.mxu0 0.0
        %1064 = vmatprep.subr.mxu0 0.0
        %1065 = vmatpush1.msra.mxu0 0.0
        %1066 = vmatprep.subr.mxu0 0.0
        %1067 = vmatpush1.msra.mxu0 0.0
        %1068 = vmatprep.subr.mxu0 0.0
        %1069 = vmatpush1.msra.mxu0 0.0
        %1070 = vmatprep.subr.mxu0 0.0
        %1071 = vmatpush1.msra.mxu0 0.0
        %1072 = vmatprep.subr.mxu0 0.0
        %1073 = vmatpush1.msra.mxu0 0.0
        %1074 = vmatprep.subr.mxu0 0.0
        %1075 = vmatpush1.msra.mxu0 0.0
        %1076 = vmatprep.subr.mxu0 0.0
        %1077 = vmatpush1.msra.mxu0 0.0
        %1078 = vmatprep.subr.mxu0 0.0
        %1079 = vmatpush1.msra.mxu0 0.0
        %1080 = vmatprep.subr.mxu0 0.0
        %1081 = vmatpush1.msra.mxu0 0.0
        %1082 = vmatprep.subr.mxu0 0.0
        %1083 = vmatpush1.msra.mxu0 0.0
        %1084 = vmatprep.subr.mxu0 0.0
        %1085 = vmatpush1.msra.mxu0 0.0
        %1086 = vmatprep.mubr.f32.mxu0 0.0
        %1087 = vmatmul.mubr.f32.gmra.mrb[0].mxu0 %v1014
        %v1088 = vpop.f32.mrb[0].mxu0
        %v1089 = vadd.f32 %v1020, %v1088
        %v1090 = vpop.f32.mrb[0].mxu0
        %1091 = vmatprep.mubr.f32.mxu0 0.0
        %1092 = vmatmul.mubr.f32.gmra.mrb[0].mxu0 %v1015
        %v1093 = vpop.f32.mrb[0].mxu0
        %v1094 = vadd.f32 %v1020, %v1093
        %v1095 = vpop.f32.mrb[0].mxu0
        %1096 = vdwg.mxu0
        %s1097 = scalar_lea.vmem [#allocation8], 512
        %v1098 = vld [vmem:[%s1097] sm:$0xff]
        %v1099 = vld [vmem:[%s1097 + $0x8] sm:$0xff]
        %v1100 = vld [vmem:[%s1097 + $0x10] sm:$0xff]
        %v1101 = vld [vmem:[%s1097 + $0x18] sm:$0xff]
        %v1102 = vld [vmem:[%s1097 + $0x20] sm:$0xff]
        %v1103 = vld [vmem:[%s1097 + $0x28] sm:$0xff]
        %v1104 = vld [vmem:[%s1097 + $0x30] sm:$0xff]
        %v1105 = vld [vmem:[%s1097 + $0x38] sm:$0xff]
        %v1106 = vld [vmem:[%s1097 + $0x40] sm:$0xff]
        %v1107 = vld [vmem:[%s1097 + $0x48] sm:$0xff]
        %v1108 = vld [vmem:[%s1097 + $0x50] sm:$0xff]
        %v1109 = vld [vmem:[%s1097 + $0x58] sm:$0xff]
        %v1110 = vld [vmem:[%s1097 + $0x60] sm:$0xff]
        %v1111 = vld [vmem:[%s1097 + $0x68] sm:$0xff]
        %v1112 = vld [vmem:[%s1097 + $0x70] sm:$0xff]
        %v1113 = vld [vmem:[%s1097 + $0x78] sm:$0xff]
        %s1114 = scalar_lea.vmem [#allocation8], 640
        %v1115 = vld [vmem:[%s1114] sm:$0xff]
        %v1116 = vld [vmem:[%s1114 + $0x8] sm:$0xff]
        %v1117 = vld [vmem:[%s1114 + $0x10] sm:$0xff]
        %v1118 = vld [vmem:[%s1114 + $0x18] sm:$0xff]
        %v1119 = vld [vmem:[%s1114 + $0x20] sm:$0xff]
        %v1120 = vld [vmem:[%s1114 + $0x28] sm:$0xff]
        %v1121 = vld [vmem:[%s1114 + $0x30] sm:$0xff]
        %v1122 = vld [vmem:[%s1114 + $0x38] sm:$0xff]
        %v1123 = vld [vmem:[%s1114 + $0x40] sm:$0xff]
        %v1124 = vld [vmem:[%s1114 + $0x48] sm:$0xff]
        %v1125 = vld [vmem:[%s1114 + $0x50] sm:$0xff]
        %v1126 = vld [vmem:[%s1114 + $0x58] sm:$0xff]
        %v1127 = vld [vmem:[%s1114 + $0x60] sm:$0xff]
        %v1128 = vld [vmem:[%s1114 + $0x68] sm:$0xff]
        %v1129 = vld [vmem:[%s1114 + $0x70] sm:$0xff]
        %v1130 = vld [vmem:[%s1114 + $0x78] sm:$0xff]
        %s1131 = scalar_lea.vmem %s5, 8
        %v1132 = vld [vmem:[%s1131] sm:$0x1]
        %s1133 = scalar_lea.vmem %s5, 9
        %v1134 = vld [vmem:[%s1133] sm:$0x1]
        %s1135 = scalar_lea.vmem %s5, 10
        %v1136 = vld [vmem:[%s1135] sm:$0x1]
        %s1137 = scalar_lea.vmem %s5, 11
        %v1138 = vld [vmem:[%s1137] sm:$0x1]
        %v1140 = vlaneseq
        %v1141 = vshrl.u32 %v1140, 7
        %v1142 = vsub.s32 0, %v1141
        %v1143 = vrot.slane %v1132, %v1142
        %1145 = vmatprep.subr.mxu0 0.0
        %1146 = vmatpush1.msra.mxu0 %v1098
        %1147 = vmatprep.subr.mxu0 0.0
        %1148 = vmatpush1.msra.mxu0 %v1099
        %1149 = vmatprep.subr.mxu0 0.0
        %1150 = vmatpush1.msra.mxu0 %v1100
        %1151 = vmatprep.subr.mxu0 0.0
        %1152 = vmatpush1.msra.mxu0 %v1101
        %1153 = vmatprep.subr.mxu0 0.0
        %1154 = vmatpush1.msra.mxu0 %v1102
        %1155 = vmatprep.subr.mxu0 0.0
        %1156 = vmatpush1.msra.mxu0 %v1103
        %1157 = vmatprep.subr.mxu0 0.0
        %1158 = vmatpush1.msra.mxu0 %v1104
        %1159 = vmatprep.subr.mxu0 0.0
        %1160 = vmatpush1.msra.mxu0 %v1105
        %1161 = vmatprep.subr.mxu0 0.0
        %1162 = vmatpush1.msra.mxu0 %v1106
        %1163 = vmatprep.subr.mxu0 0.0
        %1164 = vmatpush1.msra.mxu0 %v1107
        %1165 = vmatprep.subr.mxu0 0.0
        %1166 = vmatpush1.msra.mxu0 %v1108
        %1167 = vmatprep.subr.mxu0 0.0
        %1168 = vmatpush1.msra.mxu0 %v1109
        %1169 = vmatprep.subr.mxu0 0.0
        %1170 = vmatpush1.msra.mxu0 %v1110
        %1171 = vmatprep.subr.mxu0 0.0
        %1172 = vmatpush1.msra.mxu0 %v1111
        %1173 = vmatprep.subr.mxu0 0.0
        %1174 = vmatpush1.msra.mxu0 %v1112
        %1175 = vmatprep.subr.mxu0 0.0
        %1176 = vmatpush1.msra.mxu0 %v1113
        %1177 = vmatprep.subr.mxu0 0.0
        %1178 = vmatpush1.msra.mxu0 0.0
        %1179 = vmatprep.subr.mxu0 0.0
        %1180 = vmatpush1.msra.mxu0 0.0
        %1181 = vmatprep.subr.mxu0 0.0
        %1182 = vmatpush1.msra.mxu0 0.0
        %1183 = vmatprep.subr.mxu0 0.0
        %1184 = vmatpush1.msra.mxu0 0.0
        %1185 = vmatprep.subr.mxu0 0.0
        %1186 = vmatpush1.msra.mxu0 0.0
        %1187 = vmatprep.subr.mxu0 0.0
        %1188 = vmatpush1.msra.mxu0 0.0
        %1189 = vmatprep.subr.mxu0 0.0
        %1190 = vmatpush1.msra.mxu0 0.0
        %1191 = vmatprep.subr.mxu0 0.0
        %1192 = vmatpush1.msra.mxu0 0.0
        %1193 = vmatprep.subr.mxu0 0.0
        %1194 = vmatpush1.msra.mxu0 0.0
        %1195 = vmatprep.subr.mxu0 0.0
        %1196 = vmatpush1.msra.mxu0 0.0
        %1197 = vmatprep.subr.mxu0 0.0
        %1198 = vmatpush1.msra.mxu0 0.0
        %1199 = vmatprep.subr.mxu0 0.0
        %1200 = vmatpush1.msra.mxu0 0.0
        %1201 = vmatprep.subr.mxu0 0.0
        %1202 = vmatpush1.msra.mxu0 0.0
        %1203 = vmatprep.subr.mxu0 0.0
        %1204 = vmatpush1.msra.mxu0 0.0
        %1205 = vmatprep.subr.mxu0 0.0
        %1206 = vmatpush1.msra.mxu0 0.0
        %1207 = vmatprep.subr.mxu0 0.0
        %1208 = vmatpush1.msra.mxu0 0.0
        %1209 = vmatprep.mubr.f32.mxu0 0.0
        %1210 = vmatmul.mubr.f32.gmra.mrb[0].mxu0 %v596
        %v1211 = vpop.f32.mrb[0].mxu0
        %v1212 = vadd.f32 %v1143, %v1211
        %v1213 = vpop.f32.mrb[0].mxu0
        %1214 = vmatprep.mubr.f32.mxu0 0.0
        %1215 = vmatmul.mubr.f32.gmra.mrb[0].mxu0 %v597
        %v1216 = vpop.f32.mrb[0].mxu0
        %v1217 = vadd.f32 %v1143, %v1216
        %v1218 = vpop.f32.mrb[0].mxu0
        %1219 = vdwg.mxu0
        %v1220 = vadd.f32 %v1212, %v1217
        %v1221 = vrot.slane %v1220, 4
        %v1222 = vadd.f32 %v1220, %v1221
        %v1223 = vrot.slane %v1222, 2
        %v1224 = vadd.f32 %v1222, %v1223
        %v1225 = vrot.slane %v1224, 1
        %v1226 = vadd.f32 %v1224, %v1225
        %v1227 = vmul.f32 %v1226, %v726
        %v1228 = vsub.f32 %v1212, %v1227
        %v1229 = vsub.f32 %v1217, %v1227
        %v1230 = vmul.f32 %v1228, %v1228
        %v1231 = vmul.f32 %v1229, %v1229
        %v1232 = vadd.f32 %v1230, %v1231
        %v1233 = vrot.slane %v1232, 4
        %v1234 = vadd.f32 %v1232, %v1233
        %v1235 = vrot.slane %v1234, 2
        %v1236 = vadd.f32 %v1234, %v1235
        %v1237 = vrot.slane %v1236, 1
        %v1238 = vadd.f32 %v1236, %v1237
        %v1239 = vmul.f32 %v1238, %v726
        %v1240 = vadd.f32 %v1239, 1e-05
        %v1241 = vrsqrt.pop %v1240
        %v1242 = vmul.f32 %v1228, %v1241
        %v1243 = vmul.f32 %v1229, %v1241
        %v1245 = vlaneseq
        %v1246 = vshrl.u32 %v1245, 7
        %v1247 = vsub.s32 0, %v1246
        %v1248 = vrot.slane %v1134, %v1247
        %v1250 = vmul.f32 %v1242, %v1248
        %v1251 = vmul.f32 %v1243, %v1248
        %v1253 = vlaneseq
        %v1254 = vshrl.u32 %v1253, 7
        %v1255 = vsub.s32 0, %v1254
        %v1256 = vrot.slane %v1136, %v1255
        %v1258 = vadd.f32 %v1250, %v1256
        %v1259 = vadd.f32 %v1251, %v1256
        %vm1260 = vcmp.ge.f32.partialorder %v1258, 0.0
        %vm1261 = vcmp.ge.f32.partialorder %v1259, 0.0
        %v1262 = vmul.f32 %v1258, 0.25
        %v1263 = vmul.f32 %v1259, 0.25
        %v1264 = vsel %vm1260, %v1258, %v1262
        %v1265 = vsel %vm1261, %v1259, %v1263
        %v1267 = vlaneseq
        %v1268 = vshrl.u32 %v1267, 7
        %v1269 = vsub.s32 0, %v1268
        %v1270 = vrot.slane %v1138, %v1269
        %1272 = vmatprep.subr.mxu0 0.0
        %1273 = vmatpush1.msra.mxu0 %v1115
        %1274 = vmatprep.subr.mxu0 0.0
        %1275 = vmatpush1.msra.mxu0 %v1116
        %1276 = vmatprep.subr.mxu0 0.0
        %1277 = vmatpush1.msra.mxu0 %v1117
        %1278 = vmatprep.subr.mxu0 0.0
        %1279 = vmatpush1.msra.mxu0 %v1118
        %1280 = vmatprep.subr.mxu0 0.0
        %1281 = vmatpush1.msra.mxu0 %v1119
        %1282 = vmatprep.subr.mxu0 0.0
        %1283 = vmatpush1.msra.mxu0 %v1120
        %1284 = vmatprep.subr.mxu0 0.0
        %1285 = vmatpush1.msra.mxu0 %v1121
        %1286 = vmatprep.subr.mxu0 0.0
        %1287 = vmatpush1.msra.mxu0 %v1122
        %1288 = vmatprep.subr.mxu0 0.0
        %1289 = vmatpush1.msra.mxu0 %v1123
        %1290 = vmatprep.subr.mxu0 0.0
        %1291 = vmatpush1.msra.mxu0 %v1124
        %1292 = vmatprep.subr.mxu0 0.0
        %1293 = vmatpush1.msra.mxu0 %v1125
        %1294 = vmatprep.subr.mxu0 0.0
        %1295 = vmatpush1.msra.mxu0 %v1126
        %1296 = vmatprep.subr.mxu0 0.0
        %1297 = vmatpush1.msra.mxu0 %v1127
        %1298 = vmatprep.subr.mxu0 0.0
        %1299 = vmatpush1.msra.mxu0 %v1128
        %1300 = vmatprep.subr.mxu0 0.0
        %1301 = vmatpush1.msra.mxu0 %v1129
        %1302 = vmatprep.subr.mxu0 0.0
        %1303 = vmatpush1.msra.mxu0 %v1130
        %1304 = vmatprep.subr.mxu0 0.0
        %1305 = vmatpush1.msra.mxu0 0.0
        %1306 = vmatprep.subr.mxu0 0.0
        %1307 = vmatpush1.msra.mxu0 0.0
        %1308 = vmatprep.subr.mxu0 0.0
        %1309 = vmatpush1.msra.mxu0 0.0
        %1310 = vmatprep.subr.mxu0 0.0
        %1311 = vmatpush1.msra.mxu0 0.0
        %1312 = vmatprep.subr.mxu0 0.0
        %1313 = vmatpush1.msra.mxu0 0.0
        %1314 = vmatprep.subr.mxu0 0.0
        %1315 = vmatpush1.msra.mxu0 0.0
        %1316 = vmatprep.subr.mxu0 0.0
        %1317 = vmatpush1.msra.mxu0 0.0
        %1318 = vmatprep.subr.mxu0 0.0
        %1319 = vmatpush1.msra.mxu0 0.0
        %1320 = vmatprep.subr.mxu0 0.0
        %1321 = vmatpush1.msra.mxu0 0.0
        %1322 = vmatprep.subr.mxu0 0.0
        %1323 = vmatpush1.msra.mxu0 0.0
        %1324 = vmatprep.subr.mxu0 0.0
        %1325 = vmatpush1.msra.mxu0 0.0
        %1326 = vmatprep.subr.mxu0 0.0
        %1327 = vmatpush1.msra.mxu0 0.0
        %1328 = vmatprep.subr.mxu0 0.0
        %1329 = vmatpush1.msra.mxu0 0.0
        %1330 = vmatprep.subr.mxu0 0.0
        %1331 = vmatpush1.msra.mxu0 0.0
        %1332 = vmatprep.subr.mxu0 0.0
        %1333 = vmatpush1.msra.mxu0 0.0
        %1334 = vmatprep.subr.mxu0 0.0
        %1335 = vmatpush1.msra.mxu0 0.0
        %1336 = vmatprep.mubr.f32.mxu0 0.0
        %1337 = vmatmul.mubr.f32.gmra.mrb[0].mxu0 %v1264
        %v1338 = vpop.f32.mrb[0].mxu0
        %v1339 = vadd.f32 %v1270, %v1338
        %v1340 = vpop.f32.mrb[0].mxu0
        %1341 = vmatprep.mubr.f32.mxu0 0.0
        %1342 = vmatmul.mubr.f32.gmra.mrb[0].mxu0 %v1265
        %v1343 = vpop.f32.mrb[0].mxu0
        %v1344 = vadd.f32 %v1270, %v1343
        %v1345 = vpop.f32.mrb[0].mxu0
        %1346 = vdwg.mxu0
        %v1347 = vmul.f32 %v1089, %v1089
        %v1348 = vmul.f32 %v1094, %v1094
        %1349 = vadd.xlane.f32.xlu0 %v1347
        %v1350 = vpop.xlane.xlu0 %1349
        %1351 = vadd.xlane.f32.xlu0 %v1348
        %v1352 = vpop.xlane.xlu0 %1351
        %v1353 = vmax.f32 %v1350, 1e-24
        %v1354 = vmax.f32 %v1352, 1e-24
        %v1355 = vrsqrt.pop %v1353
        %v1356 = vrsqrt.pop %v1354
        %v1357 = vmul.f32 %v1089, %v1355
        %v1358 = vmul.f32 %v1094, %v1356
        %1359 = vst [vmem:[%s369] sm:$0xff] %v1357
        %1360 = vst [vmem:[%s369 + $0x8] sm:$0xff] %v1358
        %v1361 = vmul.f32 %v1339, %v1339
        %v1362 = vmul.f32 %v1344, %v1344
        %1363 = vadd.xlane.f32.xlu0 %v1361
        %v1364 = vpop.xlane.xlu0 %1363
        %1365 = vadd.xlane.f32.xlu0 %v1362
        %v1366 = vpop.xlane.xlu0 %1365
        %v1367 = vmax.f32 %v1364, 1e-24
        %v1368 = vmax.f32 %v1366, 1e-24
        %v1369 = vrsqrt.pop %v1367
        %v1370 = vrsqrt.pop %v1368
        %v1371 = vmul.f32 %v1339, %v1369
        %v1372 = vmul.f32 %v1344, %v1370
        %1373 = vst [vmem:[%s376] sm:$0xff] %v1371
        %1374 = vst [vmem:[%s376 + $0x8] sm:$0xff] %v1372
        %s1375 = sand.u32 %s176, 1
        %s1376 = scalar_lea.sflag [#allocation4], %s1375
        %s1377 = sand.u32 %s176, 1
        %s1378 = smul.addr %s1377, 16
        %s1379 = scalar_lea.vmem [#allocation10], %s1378
        %s1380 = sand.u32 %s202, 1
        %s1381 = scalar_lea.sflag [#allocation12], %s1380
        %s1382 = sand.u32 %s202, 1
        %s1383 = smul.addr %s1382, 16
        %s1384 = scalar_lea.vmem [#allocation11], %s1383
        // Predicated region
        $region61: #{tpu_custom_call.1} parent=43 // pred_check
          %p1385 = pneg %p186
        $region62: #{tpu_custom_call.1} parent=43 // pred_check_branch
          %1387 = sbr.rel (%p1385) target = $region64
        $region63: #{tpu_custom_call.1} parent=43 // pred_region
          %s1389 = ssub.s32 256, 256
          %1390 = vsyncadd %s1376, %s1389
          %s1391 = smul.addr %s32, 2
          %s1392 = smul.addr %s1391, 128
          %s1393 = scalar_lea.hbm %s6, %s1392
          %s1394 = sshll.u32 %s1379, 4
          %s1395 = int_to_ptr.vmem [resolvable:$true] %s1394
          %1400 = dma.vmem_to_hbm [thread:$0]  %s1395, 256, %s1393, %s1376, 128, 128, 8
        $region64: #{tpu_custom_call.1} parent=43 // pred_fallthru
          _
        // Predicated region
        $region65: #{tpu_custom_call.1} parent=43 // pred_check
          %p1401 = pneg %p212
        $region66: #{tpu_custom_call.1} parent=43 // pred_check_branch
          %1403 = sbr.rel (%p1401) target = $region68
        $region67: #{tpu_custom_call.1} parent=43 // pred_region
          %s1405 = ssub.s32 256, 256
          %1406 = vsyncadd %s1381, %s1405
          %s1407 = smul.addr %s32, 2
          %s1408 = smul.addr %s1407, 128
          %s1409 = scalar_lea.hbm %s7, %s1408
          %s1410 = sshll.u32 %s1384, 4
          %s1411 = int_to_ptr.vmem [resolvable:$true] %s1410
          %1416 = dma.vmem_to_hbm [thread:$0]  %s1411, 256, %s1409, %s1381, 128, 128, 8
        $region68: #{tpu_custom_call.1} parent=43 // pred_fallthru
          _
      $region44: #{tpu_custom_call.1} parent=5 // pred_fallthru
        _
      %p1417 = scmp.le.s32.totalorder 2, %s27
      // Predicated region
      $region69: #{tpu_custom_call.1} parent=5 // pred_check
        %p1418 = pneg %p1417
      $region70: #{tpu_custom_call.1} parent=5 // pred_check_branch
        %1420 = sbr.rel (%p1418) target = $region72
      $region71: #{tpu_custom_call.1} parent=5 // pred_region
        %s1421 = ssub.s32 %s27, 2
        // Predicated region
        $region73: #{tpu_custom_call.1} parent=71 // pred_check
          %p1422 = pneg %p192
        $region74: #{tpu_custom_call.1} parent=71 // pred_check_branch
          %1424 = sbr.rel (%p1422) target = $region76
        $region75: #{tpu_custom_call.1} parent=71 // pred_region
          %s1425 = sand.u32 %s177, 1
          %s1426 = scalar_lea.sflag [#allocation4], %s1425
          %s1427 = sand.u32 %s177, 1
          %s1428 = smul.addr %s1427, 16
          %s1429 = scalar_lea.vmem [#allocation10], %s1428
          %1430 = dma.done %s1426, 256
        $region76: #{tpu_custom_call.1} parent=71 // pred_fallthru
          _
        // Predicated region
        $region77: #{tpu_custom_call.1} parent=71 // pred_check
          %p1431 = pneg %p218
        $region78: #{tpu_custom_call.1} parent=71 // pred_check_branch
          %1433 = sbr.rel (%p1431) target = $region80
        $region79: #{tpu_custom_call.1} parent=71 // pred_region
          %s1434 = sand.u32 %s203, 1
          %s1435 = scalar_lea.sflag [#allocation12], %s1434
          %s1436 = sand.u32 %s203, 1
          %s1437 = smul.addr %s1436, 16
          %s1438 = scalar_lea.vmem [#allocation11], %s1437
          %1439 = dma.done %s1435, 256
        $region80: #{tpu_custom_call.1} parent=71 // pred_fallthru
          _
      $region72: #{tpu_custom_call.1} parent=5 // pred_fallthru
        _
    $region6: #{tpu_custom_call.1} parent=1 // loop_footer
      %s31 = sadd.s32 1, %s27
    $region7: #{tpu_custom_call.1} parent=1 // loop_footer_branch
      %26 = sbr.rel target = $region3
    $region8: #{tpu_custom_call.1} parent=1 // loop_exit
      _
    %1440 = vsyncpa [#allocation3], 1
    %s1441 = scalar_lea.sflag [#allocation3], 1
    %1442 = vsyncpa %s1441, 1
    %1443 = vsyncpa [#allocation6], 1
    %s1444 = scalar_lea.sflag [#allocation6], 1
    %1445 = vsyncpa %s1444, 1
    %1446 = vsyncpa [#allocation9], 1
    %1447 = vsyncpa [#allocation4], 1
    %s1448 = scalar_lea.sflag [#allocation4], 1
    %1449 = vsyncpa %s1448, 1
    %1450 = vsyncpa [#allocation12], 1
    %s1451 = scalar_lea.sflag [#allocation12], 1
    %1452 = vsyncpa %s1451, 1

</llo_original>
